<compile_context>
chip_gen: v7x
topology: tpu7x:2x2x1
jax: 0.10.0
libtpu: 0.0.40
codegen_flags: <defaults>
</compile_context>

<pallas_src>
import math

import jax
import jax.numpy as jnp
from jax.experimental import pallas as pl
from jax.experimental.pallas import tpu as pltpu

_LANE = 128
_SUBLANE = 8


def _round_up(n, m):
    return ((n + m - 1) // m) * m


def _cdiv(a, b):
    return (a + b - 1) // b


# ---------------------------------------------------------------------------
# Kernel: the whole 3-layer MLP fused.  x / out are batch tiles; weights and
# biases are full arrays, VMEM-resident via constant index_maps.
# ---------------------------------------------------------------------------
def _mlp_kernel(x_ref, w1_ref, b1_ref, w2_ref, b2_ref, w3_ref, b3_ref, o_ref):
    x = x_ref[...]
    h1 = jnp.dot(x, w1_ref[...], preferred_element_type=jnp.float32) + b1_ref[...]
    h1 = jnp.maximum(h1, 0.0)
    h2 = jnp.dot(h1, w2_ref[...], preferred_element_type=jnp.float32) + b2_ref[...]
    h2 = jnp.maximum(h2, 0.0)
    out = jnp.dot(h2, w3_ref[...], preferred_element_type=jnp.float32) + b3_ref[...]
    o_ref[...] = out.astype(o_ref.dtype)


# ---------------------------------------------------------------------------
# One-time parameter prep (hoisted out of the per-call hot path).
# ---------------------------------------------------------------------------
def _block_diag(w, fold):
    """(k, n) -> (fold*k, fold*n) with `w` repeated on the diagonal blocks."""
    return jnp.kron(jnp.eye(fold, dtype=w.dtype), w)


def prepare_params(params, *, max_folded_weight_bytes=8 * 1024 * 1024):
    """Builds the kernel-ready weights.

    If out_dim is not a multiple of 128 lanes, fold = lcm(out_dim,128)/out_dim
    batch rows are packed into the lane axis: weights become block-diagonal
    and biases are tiled, so the kernel's output tile is exactly 128*k lanes
    wide with zero padding bytes written to HBM.
    """
    w1, b1 = params["w1"], params["b1"]
    w2, b2 = params["w2"], params["b2"]
    w3, b3 = params["w3"], params["b3"]
    in_dim, out_dim = w1.shape[0], w3.shape[1]

    fold = 1
    if out_dim % _LANE != 0:
        f = _LANE // math.gcd(out_dim, _LANE)          # lcm(out_dim,128)//out_dim
        folded_bytes = f * f * 4 * (w1.size + w2.size + w3.size)
        # Keep folded weights comfortably inside v7x's 64 MiB VMEM (single-
        # buffered, plus activation tiles) -- otherwise fall back to padding.
        if folded_bytes <= max_folded_weight_bytes:
            fold = f

    if fold > 1:
        weights = (
            _block_diag(w1, fold), jnp.tile(b1, (1, fold)),
            _block_diag(w2, fold), jnp.tile(b2, (1, fold)),
            _block_diag(w3, fold), jnp.tile(b3, (1, fold)),
        )
    else:
        # Fallback: lane-dense output via zero-padded last layer (padded
        # columns are exact zeros, sliced off after the kernel).
        out_pad = _round_up(out_dim, _LANE)
        if out_pad != out_dim:
            w3 = jnp.pad(w3, ((0, 0), (0, out_pad - out_dim)))
            b3 = jnp.pad(b3, ((0, 0), (0, out_pad - out_dim)))
        weights = (w1, b1, w2, b2, w3, b3)

    return {
        "weights": weights,
        "fold": fold,
        "in_dim": in_dim,
        "out_dim": out_dim,
        "feat_out": weights[4].shape[1],
    }


# Probed once: whether this JAX build accepts single-buffered resident weights
# (pl.Buffered(1)).  If not, fall back to default double buffering (costs only
# a little extra VMEM for these weight sizes).
_SINGLE_BUFFER_WEIGHTS = {"ok": True}


def mlp_forward(x, prepared, *, block_batch=4096, min_split_batch=1024):
    """x: (B, input_dim) float32; `prepared` comes from prepare_params()."""
    w_args = prepared["weights"]
    fold = prepared["fold"]
    in_dim = prepared["in_dim"]
    out_dim = prepared["out_dim"]
    feat_out = prepared["feat_out"]

    B, xd = x.shape
    assert xd == in_dim, "input feature dim mismatch"

    # ---- grid: even batch split --------------------------------------------
    n_steps = _cdiv(B, block_batch)
    if B >= min_split_batch:
        # v7x has two TensorCores: give the ("parallel",) batch axis an even
        # number of >= 2 steps so both cores get balanced work.
        n_steps = max(n_steps, 2)
        n_steps += n_steps % 2

    # Tile alignment: tb must be a multiple of `fold`, and the folded tile's
    # sublane dim (tb // fold) a multiple of 8 whenever the block is not the
    # full array.  Pad is at most n_steps*align-1 rows (0 for aligned batches).
    align = fold * (_SUBLANE if n_steps > 1 else 1)
    tb = _round_up(_cdiv(B, n_steps), align)
    b_pad = n_steps * tb

    xp = jnp.pad(x, ((0, b_pad - B), (0, 0))) if b_pad != B else x

    # ---- fold the batch into the lane axis (free row-major reinterpret) ----
    rows, tr = b_pad // fold, tb // fold
    feat_in = fold * in_dim
    x_in = xp.reshape(rows, feat_in)

    def call(single_buffer_weights):
        if single_buffer_weights:
            def wspec(w):
                return pl.BlockSpec(w.shape, lambda i: (0, 0),
                                    pipeline_mode=pl.Buffered(1))
        else:
            def wspec(w):
                return pl.BlockSpec(w.shape, lambda i: (0, 0))
        return pl.pallas_call(
            _mlp_kernel,
            out_shape=jax.ShapeDtypeStruct((rows, feat_out), x.dtype),
            grid=(n_steps,),
            in_specs=[pl.BlockSpec((tr, feat_in), lambda i: (i, 0))]
                     + [wspec(w) for w in w_args],
            out_specs=pl.BlockSpec((tr, feat_out), lambda i: (i, 0)),
            compiler_params=pltpu.CompilerParams(
                # Batch axis is embarrassingly parallel -> megacore sharding.
                dimension_semantics=("parallel",),
                # Conservative explicit limit; fits v5e/v6e (128 MiB) and
                # v7x (64 MiB physical VMEM).
                vmem_limit_bytes=48 * 1024 * 1024,
            ),
        )(x_in, *w_args)

    if _SINGLE_BUFFER_WEIGHTS["ok"]:
        try:
            out = call(True)
        except Exception:
            _SINGLE_BUFFER_WEIGHTS["ok"] = False
            out = call(False)
    else:
        out = call(False)

    # ---- unfold / unpad (touches only the small final output tensor) -------
    if fold > 1:
        out = out.reshape(b_pad, out_dim)        # free: same row-major bytes
    elif feat_out != out_dim:
        out = out[:, :out_dim]                   # drop zero-padded columns
    return out[:B] if b_pad != B else out


# ---------------------------------------------------------------------------
# Init / reference
# ---------------------------------------------------------------------------
def init_params(key, input_dim, hidden_dim, output_dim):
    """nn.Linear-style U(-1/sqrt(fan_in), 1/sqrt(fan_in)) init.

    Weights are stored (in_features, out_features) -- pre-transposed relative
    to PyTorch's (out, in) layout -- so the forward pass is x @ W + b.
    """
    dims = [(input_dim, hidden_dim), (hidden_dim, 32), (32, output_dim)]
    params = {}
    for i, (fan_in, fan_out) in enumerate(dims, start=1):
        key, kw, kb = jax.random.split(key, 3)
        bound = 1.0 / math.sqrt(fan_in)
        params[f"w{i}"] = jax.random.uniform(
            kw, (fan_in, fan_out), jnp.float32, -bound, bound)
        params[f"b{i}"] = jax.random.uniform(
            kb, (1, fan_out), jnp.float32, -bound, bound)
    return params


def mlp_reference(x, params):
    h1 = jnp.maximum(x @ params["w1"] + params["b1"], 0.0)
    h2 = jnp.maximum(h1 @ params["w2"] + params["b2"], 0.0)
    return h2 @ params["w3"] + params["b3"]


if __name__ == "__main__":
    key = jax.random.PRNGKey(0)
    batch, input_dim, hidden_dim, output_dim = 8, 16, 32, 8

    key, kx = jax.random.split(key)
    x = jax.random.normal(kx, (batch, input_dim), jnp.float32)
    params = init_params(key, input_dim, hidden_dim, output_dim)
    prepared = prepare_params(params)

    out = jax.block_until_ready(mlp_forward(x, prepared))
    ref = mlp_reference(x, params)
    assert out.shape == (batch, output_dim)
    assert jnp.allclose(out, ref, atol=1e-5, rtol=1e-5), "mismatch vs reference"

    # Multi-step grid (forced 2-way split for megacore) + ragged-batch path.
    key, kx2 = jax.random.split(key)
    x_big = jax.random.normal(kx2, (1030, input_dim), jnp.float32)
    out_big = jax.block_until_ready(mlp_forward(x_big, prepared))
    ref_big = mlp_reference(x_big, params)
    assert out_big.shape == (1030, output_dim)
    assert jnp.allclose(out_big, ref_big, atol=1e-4, rtol=1e-4), \
        "mismatch vs reference (big batch)"

    print("KERNEL_OK")
</pallas_src>

<mosaic_0001>
module attributes {stable_mosaic.version = 11 : i64} {
  func.func @_mlp_kernel(%arg0: i32, %arg1: memref<1x256xf32, #tpu.memory_space<vmem>>, %arg2: memref<256x512xf32, #tpu.memory_space<vmem>>, %arg3: memref<1x512xf32, #tpu.memory_space<vmem>>, %arg4: memref<512x512xf32, #tpu.memory_space<vmem>>, %arg5: memref<1x512xf32, #tpu.memory_space<vmem>>, %arg6: memref<512x128xf32, #tpu.memory_space<vmem>>, %arg7: memref<1x128xf32, #tpu.memory_space<vmem>>, %arg8: memref<1x128xf32, #tpu.memory_space<vmem>>) attributes {dimension_semantics = [#tpu.dimension_semantics<parallel>], iteration_bounds = array<i64: 1>, scalar_prefetch = 0 : i64, scratch_operands = 0 : i64, tpu.core_type = #tpu.core_type<tc>, window_params = [{transform_indices = @transform_0, window_bounds = array<i64: 1, 256>}, {pipeline_mode = #tpu.pipeline_mode<synchronous>, transform_indices = @transform_1, window_bounds = array<i64: 256, 512>}, {pipeline_mode = #tpu.pipeline_mode<synchronous>, transform_indices = @transform_2, window_bounds = array<i64: 1, 512>}, {pipeline_mode = #tpu.pipeline_mode<synchronous>, transform_indices = @transform_3, window_bounds = array<i64: 512, 512>}, {pipeline_mode = #tpu.pipeline_mode<synchronous>, transform_indices = @transform_4, window_bounds = array<i64: 1, 512>}, {pipeline_mode = #tpu.pipeline_mode<synchronous>, transform_indices = @transform_5, window_bounds = array<i64: 512, 128>}, {pipeline_mode = #tpu.pipeline_mode<synchronous>, transform_indices = @transform_6, window_bounds = array<i64: 1, 128>}, {transform_indices = @transform_7, window_bounds = array<i64: 1, 128>}]} {
    %c0 = arith.constant 0 : index
    %c0_0 = arith.constant 0 : index
    %0 = vector.load %arg1[%c0, %c0_0] : memref<1x256xf32, #tpu.memory_space<vmem>>, vector<1x256xf32>
    %c0_1 = arith.constant 0 : index
    %c0_2 = arith.constant 0 : index
    %1 = vector.load %arg2[%c0_1, %c0_2] : memref<256x512xf32, #tpu.memory_space<vmem>>, vector<256x512xf32>
    %cst = arith.constant dense<0.000000e+00> : vector<1x512xf32>
    %2 = tpu.matmul %0, %1, %cst {dimension_numbers = #tpu.dot_dimension_numbers<[1], [0], [0], [1], [0, 0, 1, 1], [], []>} : vector<1x256xf32>, vector<256x512xf32>, vector<1x512xf32> -> vector<1x512xf32>
    %c0_3 = arith.constant 0 : index
    %c0_4 = arith.constant 0 : index
    %3 = vector.load %arg3[%c0_3, %c0_4] : memref<1x512xf32, #tpu.memory_space<vmem>>, vector<1x512xf32>
    %4 = arith.addf %2, %3 : vector<1x512xf32>
    %cst_5 = arith.constant 0.000000e+00 : f32
    %5 = vector.broadcast %cst_5 : f32 to vector<1x512xf32>
    %6 = arith.maximumf %4, %5 : vector<1x512xf32>
    %c0_6 = arith.constant 0 : index
    %c0_7 = arith.constant 0 : index
    %7 = vector.load %arg4[%c0_6, %c0_7] : memref<512x512xf32, #tpu.memory_space<vmem>>, vector<512x512xf32>
    %cst_8 = arith.constant dense<0.000000e+00> : vector<1x512xf32>
    %8 = tpu.matmul %6, %7, %cst_8 {dimension_numbers = #tpu.dot_dimension_numbers<[1], [0], [0], [1], [0, 0, 1, 1], [], []>} : vector<1x512xf32>, vector<512x512xf32>, vector<1x512xf32> -> vector<1x512xf32>
    %c0_9 = arith.constant 0 : index
    %c0_10 = arith.constant 0 : index
    %9 = vector.load %arg5[%c0_9, %c0_10] : memref<1x512xf32, #tpu.memory_space<vmem>>, vector<1x512xf32>
    %10 = arith.addf %8, %9 : vector<1x512xf32>
    %cst_11 = arith.constant 0.000000e+00 : f32
    %11 = vector.broadcast %cst_11 : f32 to vector<1x512xf32>
    %12 = arith.maximumf %10, %11 : vector<1x512xf32>
    %c0_12 = arith.constant 0 : index
    %c0_13 = arith.constant 0 : index
    %13 = vector.load %arg6[%c0_12, %c0_13] : memref<512x128xf32, #tpu.memory_space<vmem>>, vector<512x128xf32>
    %cst_14 = arith.constant dense<0.000000e+00> : vector<1x128xf32>
    %14 = tpu.matmul %12, %13, %cst_14 {dimension_numbers = #tpu.dot_dimension_numbers<[1], [0], [0], [1], [0, 0, 1, 1], [], []>} : vector<1x512xf32>, vector<512x128xf32>, vector<1x128xf32> -> vector<1x128xf32>
    %c0_15 = arith.constant 0 : index
    %c0_16 = arith.constant 0 : index
    %15 = vector.load %arg7[%c0_15, %c0_16] : memref<1x128xf32, #tpu.memory_space<vmem>>, vector<1x128xf32>
    %16 = arith.addf %14, %15 : vector<1x128xf32>
    %c0_17 = arith.constant 0 : index
    %c0_18 = arith.constant 0 : index
    %17 = vector.load %arg8[%c0_17, %c0_18] : memref<1x128xf32, #tpu.memory_space<vmem>>, vector<1x128xf32>
    tpu.vector_store %arg8[%c0_17, %c0_18], %16 {strides = array<i32>} : memref<1x128xf32, #tpu.memory_space<vmem>>, vector<1x128xf32>,
    return
  }
  func.func @transform_0(%arg0: i32) -> (i32, i32) {
    %c0_i32 = arith.constant 0 : i32
    %c0_i32_0 = arith.constant 0 : i32
    return %arg0, %c0_i32 : i32, i32
  }
  func.func @transform_1(%arg0: i32) -> (i32, i32) {
    %c0_i32 = arith.constant 0 : i32
    %c0_i32_0 = arith.constant 0 : i32
    %c0_i32_1 = arith.constant 0 : i32
    return %c0_i32, %c0_i32_0 : i32, i32
  }
  func.func @transform_2(%arg0: i32) -> (i32, i32) {
    %c0_i32 = arith.constant 0 : i32
    %c0_i32_0 = arith.constant 0 : i32
    %c0_i32_1 = arith.constant 0 : i32
    return %c0_i32, %c0_i32_0 : i32, i32
  }
  func.func @transform_3(%arg0: i32) -> (i32, i32) {
    %c0_i32 = arith.constant 0 : i32
    %c0_i32_0 = arith.constant 0 : i32
    %c0_i32_1 = arith.constant 0 : i32
    return %c0_i32, %c0_i32_0 : i32, i32
  }
  func.func @transform_4(%arg0: i32) -> (i32, i32) {
    %c0_i32 = arith.constant 0 : i32
    %c0_i32_0 = arith.constant 0 : i32
    %c0_i32_1 = arith.constant 0 : i32
    return %c0_i32, %c0_i32_0 : i32, i32
  }
  func.func @transform_5(%arg0: i32) -> (i32, i32) {
    %c0_i32 = arith.constant 0 : i32
    %c0_i32_0 = arith.constant 0 : i32
    %c0_i32_1 = arith.constant 0 : i32
    return %c0_i32, %c0_i32_0 : i32, i32
  }
  func.func @transform_6(%arg0: i32) -> (i32, i32) {
    %c0_i32 = arith.constant 0 : i32
    %c0_i32_0 = arith.constant 0 : i32
    %c0_i32_1 = arith.constant 0 : i32
    return %c0_i32, %c0_i32_0 : i32, i32
  }
  func.func @transform_7(%arg0: i32) -> (i32, i32) {
    %c0_i32 = arith.constant 0 : i32
    %c0_i32_0 = arith.constant 0 : i32
    return %arg0, %c0_i32 : i32, i32
  }
}

module attributes {stable_mosaic.version = 11 : i64} {
  func.func @_mlp_kernel(%arg0: i32, %arg1: memref<1x256xf32, #tpu.memory_space<vmem>>, %arg2: memref<256x512xf32, #tpu.memory_space<vmem>>, %arg3: memref<1x512xf32, #tpu.memory_space<vmem>>, %arg4: memref<512x512xf32, #tpu.memory_space<vmem>>, %arg5: memref<1x512xf32, #tpu.memory_space<vmem>>, %arg6: memref<512x128xf32, #tpu.memory_space<vmem>>, %arg7: memref<1x128xf32, #tpu.memory_space<vmem>>, %arg8: memref<1x128xf32, #tpu.memory_space<vmem>>) attributes {dimension_semantics = [#tpu.dimension_semantics<parallel>], iteration_bounds = array<i64: 1>, scalar_prefetch = 0 : i64, scratch_operands = 0 : i64, tpu.core_type = #tpu.core_type<tc>, window_params = [{transform_indices = @transform_0, window_bounds = array<i64: 1, 256>}, {pipeline_mode = #tpu.pipeline_mode<synchronous>, transform_indices = @transform_1, window_bounds = array<i64: 256, 512>}, {pipeline_mode = #tpu.pipeline_mode<synchronous>, transform_indices = @transform_2, window_bounds = array<i64: 1, 512>}, {pipeline_mode = #tpu.pipeline_mode<synchronous>, transform_indices = @transform_3, window_bounds = array<i64: 512, 512>}, {pipeline_mode = #tpu.pipeline_mode<synchronous>, transform_indices = @transform_4, window_bounds = array<i64: 1, 512>}, {pipeline_mode = #tpu.pipeline_mode<synchronous>, transform_indices = @transform_5, window_bounds = array<i64: 512, 128>}, {pipeline_mode = #tpu.pipeline_mode<synchronous>, transform_indices = @transform_6, window_bounds = array<i64: 1, 128>}, {transform_indices = @transform_7, window_bounds = array<i64: 1, 128>}]} {
    %c0 = arith.constant 0 : index
    %c0_0 = arith.constant 0 : index
    %0 = vector.load %arg1[%c0, %c0_0] : memref<1x256xf32, #tpu.memory_space<vmem>>, vector<1x256xf32>
    %c0_1 = arith.constant 0 : index
    %c0_2 = arith.constant 0 : index
    %1 = vector.load %arg2[%c0_1, %c0_2] : memref<256x512xf32, #tpu.memory_space<vmem>>, vector<256x512xf32>
    %cst = arith.constant dense<0.000000e+00> : vector<1x512xf32>
    %2 = tpu.matmul %0, %1, %cst {dimension_numbers = #tpu.dot_dimension_numbers<[1], [0], [0], [1], [0, 0, 1, 1], [], []>} : vector<1x256xf32>, vector<256x512xf32>, vector<1x512xf32> -> vector<1x512xf32>
    %c0_3 = arith.constant 0 : index
    %c0_4 = arith.constant 0 : index
    %3 = vector.load %arg3[%c0_3, %c0_4] : memref<1x512xf32, #tpu.memory_space<vmem>>, vector<1x512xf32>
    %4 = arith.addf %2, %3 : vector<1x512xf32>
    %cst_5 = arith.constant 0.000000e+00 : f32
    %5 = vector.broadcast %cst_5 : f32 to vector<1x512xf32>
    %6 = arith.maximumf %4, %5 : vector<1x512xf32>
    %c0_6 = arith.constant 0 : index
    %c0_7 = arith.constant 0 : index
    %7 = vector.load %arg4[%c0_6, %c0_7] : memref<512x512xf32, #tpu.memory_space<vmem>>, vector<512x512xf32>
    %cst_8 = arith.constant dense<0.000000e+00> : vector<1x512xf32>
    %8 = tpu.matmul %6, %7, %cst_8 {dimension_numbers = #tpu.dot_dimension_numbers<[1], [0], [0], [1], [0, 0, 1, 1], [], []>} : vector<1x512xf32>, vector<512x512xf32>, vector<1x512xf32> -> vector<1x512xf32>
    %c0_9 = arith.constant 0 : index
    %c0_10 = arith.constant 0 : index
    %9 = vector.load %arg5[%c0_9, %c0_10] : memref<1x512xf32, #tpu.memory_space<vmem>>, vector<1x512xf32>
    %10 = arith.addf %8, %9 : vector<1x512xf32>
    %cst_11 = arith.constant 0.000000e+00 : f32
    %11 = vector.broadcast %cst_11 : f32 to vector<1x512xf32>
    %12 = arith.maximumf %10, %11 : vector<1x512xf32>
    %c0_12 = arith.constant 0 : index
    %c0_13 = arith.constant 0 : index
    %13 = vector.load %arg6[%c0_12, %c0_13] : memref<512x128xf32, #tpu.memory_space<vmem>>, vector<512x128xf32>
    %cst_14 = arith.constant dense<0.000000e+00> : vector<1x128xf32>
    %14 = tpu.matmul %12, %13, %cst_14 {dimension_numbers = #tpu.dot_dimension_numbers<[1], [0], [0], [1], [0, 0, 1, 1], [], []>} : vector<1x512xf32>, vector<512x128xf32>, vector<1x128xf32> -> vector<1x128xf32>
    %c0_15 = arith.constant 0 : index
    %c0_16 = arith.constant 0 : index
    %15 = vector.load %arg7[%c0_15, %c0_16] : memref<1x128xf32, #tpu.memory_space<vmem>>, vector<1x128xf32>
    %16 = arith.addf %14, %15 : vector<1x128xf32>
    %c0_17 = arith.constant 0 : index
    %c0_18 = arith.constant 0 : index
    %17 = vector.load %arg8[%c0_17, %c0_18] : memref<1x128xf32, #tpu.memory_space<vmem>>, vector<1x128xf32>
    tpu.vector_store %arg8[%c0_17, %c0_18], %16 {strides = array<i32>} : memref<1x128xf32, #tpu.memory_space<vmem>>, vector<1x128xf32>,
    return
  }
  func.func @transform_0(%arg0: i32) -> (i32, i32) {
    %c0_i32 = arith.constant 0 : i32
    %c0_i32_0 = arith.constant 0 : i32
    return %arg0, %c0_i32 : i32, i32
  }
  func.func @transform_1(%arg0: i32) -> (i32, i32) {
    %c0_i32 = arith.constant 0 : i32
    %c0_i32_0 = arith.constant 0 : i32
    %c0_i32_1 = arith.constant 0 : i32
    return %c0_i32, %c0_i32_0 : i32, i32
  }
  func.func @transform_2(%arg0: i32) -> (i32, i32) {
    %c0_i32 = arith.constant 0 : i32
    %c0_i32_0 = arith.constant 0 : i32
    %c0_i32_1 = arith.constant 0 : i32
    return %c0_i32, %c0_i32_0 : i32, i32
  }
  func.func @transform_3(%arg0: i32) -> (i32, i32) {
    %c0_i32 = arith.constant 0 : i32
    %c0_i32_0 = arith.constant 0 : i32
    %c0_i32_1 = arith.constant 0 : i32
    return %c0_i32, %c0_i32_0 : i32, i32
  }
  func.func @transform_4(%arg0: i32) -> (i32, i32) {
    %c0_i32 = arith.constant 0 : i32
    %c0_i32_0 = arith.constant 0 : i32
    %c0_i32_1 = arith.constant 0 : i32
    return %c0_i32, %c0_i32_0 : i32, i32
  }
  func.func @transform_5(%arg0: i32) -> (i32, i32) {
    %c0_i32 = arith.constant 0 : i32
    %c0_i32_0 = arith.constant 0 : i32
    %c0_i32_1 = arith.constant 0 : i32
    return %c0_i32, %c0_i32_0 : i32, i32
  }
  func.func @transform_6(%arg0: i32) -> (i32, i32) {
    %c0_i32 = arith.constant 0 : i32
    %c0_i32_0 = arith.constant 0 : i32
    %c0_i32_1 = arith.constant 0 : i32
    return %c0_i32, %c0_i32_0 : i32, i32
  }
  func.func @transform_7(%arg0: i32) -> (i32, i32) {
    %c0_i32 = arith.constant 0 : i32
    %c0_i32_0 = arith.constant 0 : i32
    return %arg0, %c0_i32 : i32, i32
  }
}

</mosaic_0001>

<llo_original>
// kernel: tpu_custom_call.1
$region0: #{tpu_custom_call.1}
  #allocation0 [shape = 'u32[]', space=smem, size = 0x4, offset = 0x4, fixed_abs, tag = 'smem constant byte address 0x4 - core index']
  #allocation1 [shape = 'u32[144,128]{1,0:T(1,128)}', space=vmem, size = 0x12000, scoped, tag = 'internal scratch']
  %s0 = inlined_call_operand.hbm [shape: f32[1,256], index: 0, kind: input, shape index: {}]
  %s1 = inlined_call_operand.hbm [shape: f32[256,512], index: 1, kind: input, shape index: {}]
  %s2 = inlined_call_operand.vmem [shape: f32[1,512], index: 2, kind: input, shape index: {}]
  %s3 = inlined_call_operand.hbm [shape: f32[512,512], index: 3, kind: input, shape index: {}]
  %s4 = inlined_call_operand.vmem [shape: f32[1,512], index: 4, kind: input, shape index: {}]
  %s5 = inlined_call_operand.hbm [shape: f32[512,128], index: 5, kind: input, shape index: {}]
  %s6 = inlined_call_operand.vmem [shape: f32[1,128], index: 6, kind: input, shape index: {}]
  %s7 = inlined_call_operand.hbm [shape: f32[1,128], index: 7, kind: output, shape index: {}]
  %s8 = sld [smem:[#allocation0]]
  $region54: #{tpu_custom_call.1} parent=0
    _
  %s10 = ssub.s32 1, %s8
  %s11 = scalar_select 0, %s10, %s8
  $region1: #{tpu_custom_call.1} parent=0
    #allocation2 [shape = 'u8[1024]{0}', space=vmem, size = 0x400, scoped, tag = 'input window, operand 0, single buffered']
    #allocation3 [shape = 's32[1]{0}', space=sflag, size = 0x4, scoped, tag = 'scoped memory for tpu_custom_call.1']
    #allocation4 [shape = 's32[1]{0}', space=sflag, size = 0x4, scoped, tag = 'scoped memory for tpu_custom_call.1']
    #allocation5 [shape = 'u8[524288]{0}', space=vmem, size = 0x80000, scoped, tag = 'input window, operand 1, single buffered']
    #allocation6 [shape = 's32[1]{0}', space=sflag, size = 0x4, scoped, tag = 'scoped memory for tpu_custom_call.1']
    #allocation7 [shape = 'u8[1048576]{0}', space=vmem, size = 0x100000, scoped, tag = 'input window, operand 3, single buffered']
    #allocation8 [shape = 'u8[262144]{0}', space=vmem, size = 0x40000, scoped, tag = 'input window, operand 5, single buffered']
    #allocation9 [shape = 's32[1]{0}', space=sflag, size = 0x4, scoped, tag = 'scoped memory for tpu_custom_call.1']
    #allocation10 [shape = 'u8[512]{0}', space=vmem, size = 0x400, scoped, tag = 'output window, operand 0, single buffered']
    %12 = vsyncpa [#allocation3], 0
    %13 = vsyncpa [#allocation6], 0
    %14 = vsyncpa [#allocation9], 0
    %15 = vsyncpa [#allocation4], 0
    // Predicated region
    $region2: #{tpu_custom_call.1} parent=1 // pred_check
      _
    $region3: #{tpu_custom_call.1} parent=1 // pred_check_branch
      %17 = sbr.rel (0) target = $region5
    $region4: #{tpu_custom_call.1} parent=1 // pred_region
      %s19 = ssub.s32 32, 32
      %20 = vsyncadd [#allocation3], %s19
      %s22 = sshll.u32 [#allocation2], 4
      %s23 = int_to_ptr.vmem [resolvable:$true] %s22
      %25 = dma.hbm_to_vmem [thread:$0]  %s0, 32, %s23, [#allocation3]
    $region5: #{tpu_custom_call.1} parent=1 // pred_fallthru
      _
    // Predicated region
    $region6: #{tpu_custom_call.1} parent=1 // pred_check
      _
    $region7: #{tpu_custom_call.1} parent=1 // pred_check_branch
      %27 = sbr.rel (0) target = $region9
    $region8: #{tpu_custom_call.1} parent=1 // pred_region
      %s29 = ssub.s32 16384, 16384
      %30 = vsyncadd [#allocation6], %s29
      %s31 = sshll.u32 [#allocation5], 4
      %s32 = int_to_ptr.vmem [resolvable:$true] %s31
      %37 = dma.hbm_to_vmem [thread:$0]  %s1, 16384, %s32, [#allocation6], 512, 512, 32
    $region9: #{tpu_custom_call.1} parent=1 // pred_fallthru
      _
    // Predicated region
    $region10: #{tpu_custom_call.1} parent=1 // pred_check
      _
    $region11: #{tpu_custom_call.1} parent=1 // pred_check_branch
      %39 = sbr.rel (0) target = $region13
    $region12: #{tpu_custom_call.1} parent=1 // pred_region
      _
    $region13: #{tpu_custom_call.1} parent=1 // pred_fallthru
      _
    // Predicated region
    $region14: #{tpu_custom_call.1} parent=1 // pred_check
      _
    $region15: #{tpu_custom_call.1} parent=1 // pred_check_branch
      %41 = sbr.rel (0) target = $region17
    $region16: #{tpu_custom_call.1} parent=1 // pred_region
      %s43 = ssub.s32 32768, 32768
      %44 = vsyncadd [#allocation6], %s43
      %s45 = sshll.u32 [#allocation7], 4
      %s46 = int_to_ptr.vmem [resolvable:$true] %s45
      %51 = dma.hbm_to_vmem [thread:$0]  %s3, 32768, %s46, [#allocation6], 512, 512, 32
    $region17: #{tpu_custom_call.1} parent=1 // pred_fallthru
      _
    // Predicated region
    $region18: #{tpu_custom_call.1} parent=1 // pred_check
      _
    $region19: #{tpu_custom_call.1} parent=1 // pred_check_branch
      %53 = sbr.rel (0) target = $region21
    $region20: #{tpu_custom_call.1} parent=1 // pred_region
      _
    $region21: #{tpu_custom_call.1} parent=1 // pred_fallthru
      _
    // Predicated region
    $region22: #{tpu_custom_call.1} parent=1 // pred_check
      _
    $region23: #{tpu_custom_call.1} parent=1 // pred_check_branch
      %55 = sbr.rel (0) target = $region25
    $region24: #{tpu_custom_call.1} parent=1 // pred_region
      %s57 = ssub.s32 8192, 8192
      %58 = vsyncadd [#allocation9], %s57
      %s59 = sshll.u32 [#allocation8], 4
      %s60 = int_to_ptr.vmem [resolvable:$true] %s59
      %65 = dma.hbm_to_vmem [thread:$0]  %s5, 8192, %s60, [#allocation9], 128, 128, 8
    $region25: #{tpu_custom_call.1} parent=1 // pred_fallthru
      _
    // Predicated region
    $region26: #{tpu_custom_call.1} parent=1 // pred_check
      _
    $region27: #{tpu_custom_call.1} parent=1 // pred_check_branch
      %67 = sbr.rel (0) target = $region29
    $region28: #{tpu_custom_call.1} parent=1 // pred_region
      _
    $region29: #{tpu_custom_call.1} parent=1 // pred_fallthru
      _
    // Predicated region
    $region30: #{tpu_custom_call.1} parent=1 // pred_check
      _
    $region31: #{tpu_custom_call.1} parent=1 // pred_check_branch
      %69 = sbr.rel (0) target = $region33
    $region32: #{tpu_custom_call.1} parent=1 // pred_region
      %70 = dma.done [#allocation3], 32
    $region33: #{tpu_custom_call.1} parent=1 // pred_fallthru
      _
    // Predicated region
    $region34: #{tpu_custom_call.1} parent=1 // pred_check
      _
    $region35: #{tpu_custom_call.1} parent=1 // pred_check_branch
      %72 = sbr.rel (0) target = $region37
    $region36: #{tpu_custom_call.1} parent=1 // pred_region
      %73 = dma.done [#allocation6], 16384
    $region37: #{tpu_custom_call.1} parent=1 // pred_fallthru
      _
    // Predicated region
    $region38: #{tpu_custom_call.1} parent=1 // pred_check
      _
    $region39: #{tpu_custom_call.1} parent=1 // pred_check_branch
      %75 = sbr.rel (0) target = $region41
    $region40: #{tpu_custom_call.1} parent=1 // pred_region
      %76 = dma.done [#allocation6], 32768
    $region41: #{tpu_custom_call.1} parent=1 // pred_fallthru
      _
    // Predicated region
    $region42: #{tpu_custom_call.1} parent=1 // pred_check
      _
    $region43: #{tpu_custom_call.1} parent=1 // pred_check_branch
      %78 = sbr.rel (0) target = $region45
    $region44: #{tpu_custom_call.1} parent=1 // pred_region
      %79 = dma.done [#allocation9], 8192
    $region45: #{tpu_custom_call.1} parent=1 // pred_fallthru
      _
    %v80 = vld [vmem:[#allocation2] sm:$0x3]
    %v81 = vld [vmem:[#allocation5] sm:$0xff]
    %v82 = vld [vmem:[#allocation5 + $0x8] sm:$0xff]
    %v83 = vld [vmem:[#allocation5 + $0x10] sm:$0xff]
    %v84 = vld [vmem:[#allocation5 + $0x18] sm:$0xff]
    %v85 = vld [vmem:[#allocation5 + $0x20] sm:$0xff]
    %v86 = vld [vmem:[#allocation5 + $0x28] sm:$0xff]
    %v87 = vld [vmem:[#allocation5 + $0x30] sm:$0xff]
    %v88 = vld [vmem:[#allocation5 + $0x38] sm:$0xff]
    %v89 = vld [vmem:[#allocation5 + $0x40] sm:$0xff]
    %v90 = vld [vmem:[#allocation5 + $0x48] sm:$0xff]
    %v91 = vld [vmem:[#allocation5 + $0x50] sm:$0xff]
    %v92 = vld [vmem:[#allocation5 + $0x58] sm:$0xff]
    %v93 = vld [vmem:[#allocation5 + $0x60] sm:$0xff]
    %v94 = vld [vmem:[#allocation5 + $0x68] sm:$0xff]
    %v95 = vld [vmem:[#allocation5 + $0x70] sm:$0xff]
    %v96 = vld [vmem:[#allocation5 + $0x78] sm:$0xff]
    %v97 = vld [vmem:[#allocation5 + $0x80] sm:$0xff]
    %v98 = vld [vmem:[#allocation5 + $0x88] sm:$0xff]
    %v99 = vld [vmem:[#allocation5 + $0x90] sm:$0xff]
    %v100 = vld [vmem:[#allocation5 + $0x98] sm:$0xff]
    %v101 = vld [vmem:[#allocation5 + $0xa0] sm:$0xff]
    %v102 = vld [vmem:[#allocation5 + $0xa8] sm:$0xff]
    %v103 = vld [vmem:[#allocation5 + $0xb0] sm:$0xff]
    %v104 = vld [vmem:[#allocation5 + $0xb8] sm:$0xff]
    %v105 = vld [vmem:[#allocation5 + $0xc0] sm:$0xff]
    %v106 = vld [vmem:[#allocation5 + $0xc8] sm:$0xff]
    %v107 = vld [vmem:[#allocation5 + $0xd0] sm:$0xff]
    %v108 = vld [vmem:[#allocation5 + $0xd8] sm:$0xff]
    %v109 = vld [vmem:[#allocation5 + $0xe0] sm:$0xff]
    %v110 = vld [vmem:[#allocation5 + $0xe8] sm:$0xff]
    %v111 = vld [vmem:[#allocation5 + $0xf0] sm:$0xff]
    %v112 = vld [vmem:[#allocation5 + $0xf8] sm:$0xff]
    %v113 = vld [vmem:[#allocation5 + $0x100] sm:$0xff]
    %v114 = vld [vmem:[#allocation5 + $0x108] sm:$0xff]
    %v115 = vld [vmem:[#allocation5 + $0x110] sm:$0xff]
    %v116 = vld [vmem:[#allocation5 + $0x118] sm:$0xff]
    %v117 = vld [vmem:[#allocation5 + $0x120] sm:$0xff]
    %v118 = vld [vmem:[#allocation5 + $0x128] sm:$0xff]
    %v119 = vld [vmem:[#allocation5 + $0x130] sm:$0xff]
    %v120 = vld [vmem:[#allocation5 + $0x138] sm:$0xff]
    %v121 = vld [vmem:[#allocation5 + $0x140] sm:$0xff]
    %v122 = vld [vmem:[#allocation5 + $0x148] sm:$0xff]
    %v123 = vld [vmem:[#allocation5 + $0x150] sm:$0xff]
    %v124 = vld [vmem:[#allocation5 + $0x158] sm:$0xff]
    %v125 = vld [vmem:[#allocation5 + $0x160] sm:$0xff]
    %v126 = vld [vmem:[#allocation5 + $0x168] sm:$0xff]
    %v127 = vld [vmem:[#allocation5 + $0x170] sm:$0xff]
    %v128 = vld [vmem:[#allocation5 + $0x178] sm:$0xff]
    %v129 = vld [vmem:[#allocation5 + $0x180] sm:$0xff]
    %v130 = vld [vmem:[#allocation5 + $0x188] sm:$0xff]
    %v131 = vld [vmem:[#allocation5 + $0x190] sm:$0xff]
    %v132 = vld [vmem:[#allocation5 + $0x198] sm:$0xff]
    %v133 = vld [vmem:[#allocation5 + $0x1a0] sm:$0xff]
    %v134 = vld [vmem:[#allocation5 + $0x1a8] sm:$0xff]
    %v135 = vld [vmem:[#allocation5 + $0x1b0] sm:$0xff]
    %v136 = vld [vmem:[#allocation5 + $0x1b8] sm:$0xff]
    %v137 = vld [vmem:[#allocation5 + $0x1c0] sm:$0xff]
    %v138 = vld [vmem:[#allocation5 + $0x1c8] sm:$0xff]
    %v139 = vld [vmem:[#allocation5 + $0x1d0] sm:$0xff]
    %v140 = vld [vmem:[#allocation5 + $0x1d8] sm:$0xff]
    %v141 = vld [vmem:[#allocation5 + $0x1e0] sm:$0xff]
    %v142 = vld [vmem:[#allocation5 + $0x1e8] sm:$0xff]
    %v143 = vld [vmem:[#allocation5 + $0x1f0] sm:$0xff]
    %v144 = vld [vmem:[#allocation5 + $0x1f8] sm:$0xff]
    %v145 = vld [vmem:[#allocation5 + $0x200] sm:$0xff]
    %v146 = vld [vmem:[#allocation5 + $0x208] sm:$0xff]
    %v147 = vld [vmem:[#allocation5 + $0x210] sm:$0xff]
    %v148 = vld [vmem:[#allocation5 + $0x218] sm:$0xff]
    %v149 = vld [vmem:[#allocation5 + $0x220] sm:$0xff]
    %v150 = vld [vmem:[#allocation5 + $0x228] sm:$0xff]
    %v151 = vld [vmem:[#allocation5 + $0x230] sm:$0xff]
    %v152 = vld [vmem:[#allocation5 + $0x238] sm:$0xff]
    %v153 = vld [vmem:[#allocation5 + $0x240] sm:$0xff]
    %v154 = vld [vmem:[#allocation5 + $0x248] sm:$0xff]
    %v155 = vld [vmem:[#allocation5 + $0x250] sm:$0xff]
    %v156 = vld [vmem:[#allocation5 + $0x258] sm:$0xff]
    %v157 = vld [vmem:[#allocation5 + $0x260] sm:$0xff]
    %v158 = vld [vmem:[#allocation5 + $0x268] sm:$0xff]
    %v159 = vld [vmem:[#allocation5 + $0x270] sm:$0xff]
    %v160 = vld [vmem:[#allocation5 + $0x278] sm:$0xff]
    %v161 = vld [vmem:[#allocation5 + $0x280] sm:$0xff]
    %v162 = vld [vmem:[#allocation5 + $0x288] sm:$0xff]
    %v163 = vld [vmem:[#allocation5 + $0x290] sm:$0xff]
    %v164 = vld [vmem:[#allocation5 + $0x298] sm:$0xff]
    %v165 = vld [vmem:[#allocation5 + $0x2a0] sm:$0xff]
    %v166 = vld [vmem:[#allocation5 + $0x2a8] sm:$0xff]
    %v167 = vld [vmem:[#allocation5 + $0x2b0] sm:$0xff]
    %v168 = vld [vmem:[#allocation5 + $0x2b8] sm:$0xff]
    %v169 = vld [vmem:[#allocation5 + $0x2c0] sm:$0xff]
    %v170 = vld [vmem:[#allocation5 + $0x2c8] sm:$0xff]
    %v171 = vld [vmem:[#allocation5 + $0x2d0] sm:$0xff]
    %v172 = vld [vmem:[#allocation5 + $0x2d8] sm:$0xff]
    %v173 = vld [vmem:[#allocation5 + $0x2e0] sm:$0xff]
    %v174 = vld [vmem:[#allocation5 + $0x2e8] sm:$0xff]
    %v175 = vld [vmem:[#allocation5 + $0x2f0] sm:$0xff]
    %v176 = vld [vmem:[#allocation5 + $0x2f8] sm:$0xff]
    %v177 = vld [vmem:[#allocation5 + $0x300] sm:$0xff]
    %v178 = vld [vmem:[#allocation5 + $0x308] sm:$0xff]
    %v179 = vld [vmem:[#allocation5 + $0x310] sm:$0xff]
    %v180 = vld [vmem:[#allocation5 + $0x318] sm:$0xff]
    %v181 = vld [vmem:[#allocation5 + $0x320] sm:$0xff]
    %v182 = vld [vmem:[#allocation5 + $0x328] sm:$0xff]
    %v183 = vld [vmem:[#allocation5 + $0x330] sm:$0xff]
    %v184 = vld [vmem:[#allocation5 + $0x338] sm:$0xff]
    %v185 = vld [vmem:[#allocation5 + $0x340] sm:$0xff]
    %v186 = vld [vmem:[#allocation5 + $0x348] sm:$0xff]
    %v187 = vld [vmem:[#allocation5 + $0x350] sm:$0xff]
    %v188 = vld [vmem:[#allocation5 + $0x358] sm:$0xff]
    %v189 = vld [vmem:[#allocation5 + $0x360] sm:$0xff]
    %v190 = vld [vmem:[#allocation5 + $0x368] sm:$0xff]
    %v191 = vld [vmem:[#allocation5 + $0x370] sm:$0xff]
    %v192 = vld [vmem:[#allocation5 + $0x378] sm:$0xff]
    %v193 = vld [vmem:[#allocation5 + $0x380] sm:$0xff]
    %v194 = vld [vmem:[#allocation5 + $0x388] sm:$0xff]
    %v195 = vld [vmem:[#allocation5 + $0x390] sm:$0xff]
    %v196 = vld [vmem:[#allocation5 + $0x398] sm:$0xff]
    %v197 = vld [vmem:[#allocation5 + $0x3a0] sm:$0xff]
    %v198 = vld [vmem:[#allocation5 + $0x3a8] sm:$0xff]
    %v199 = vld [vmem:[#allocation5 + $0x3b0] sm:$0xff]
    %v200 = vld [vmem:[#allocation5 + $0x3b8] sm:$0xff]
    %v201 = vld [vmem:[#allocation5 + $0x3c0] sm:$0xff]
    %v202 = vld [vmem:[#allocation5 + $0x3c8] sm:$0xff]
    %v203 = vld [vmem:[#allocation5 + $0x3d0] sm:$0xff]
    %v204 = vld [vmem:[#allocation5 + $0x3d8] sm:$0xff]
    %v205 = vld [vmem:[#allocation5 + $0x3e0] sm:$0xff]
    %v206 = vld [vmem:[#allocation5 + $0x3e8] sm:$0xff]
    %v207 = vld [vmem:[#allocation5 + $0x3f0] sm:$0xff]
    %v208 = vld [vmem:[#allocation5 + $0x3f8] sm:$0xff]
    %v209 = vld [vmem:[%s2] sm:$0xf]
    %v211 = vlaneseq
    %v212 = vshrl.u32 %v211, 7
    %v213 = vsub.s32 0, %v212
    %v214 = vrot.slane %v80, %v213
    %v215 = vlaneseq
    %v216 = vshrl.u32 %v215, 7
    %v217 = vsub.s32 1, %v216
    %v218 = vrot.slane %v80, %v217
    %v222 = vlaneseq
    %v223 = vshrl.u32 %v222, 7
    %v224 = vsub.s32 0, %v223
    %v225 = vrot.slane %v209, %v224
    %v226 = vlaneseq
    %v227 = vshrl.u32 %v226, 7
    %v228 = vsub.s32 1, %v227
    %v229 = vrot.slane %v209, %v228
    %v230 = vlaneseq
    %v231 = vshrl.u32 %v230, 7
    %v232 = vsub.s32 2, %v231
    %v233 = vrot.slane %v209, %v232
    %v234 = vlaneseq
    %v235 = vshrl.u32 %v234, 7
    %v236 = vsub.s32 3, %v235
    %v237 = vrot.slane %v209, %v236
    %242 = vmatprep.subr.mxu0 %v82
    %243 = vmatpush1.msra.mxu0 %v81
    %244 = vmatprep.subr.mxu0 %v86
    %245 = vmatpush1.msra.mxu0 %v85
    %246 = vmatprep.subr.mxu0 %v90
    %247 = vmatpush1.msra.mxu0 %v89
    %248 = vmatprep.subr.mxu0 %v94
    %249 = vmatpush1.msra.mxu0 %v93
    %250 = vmatprep.subr.mxu0 %v98
    %251 = vmatpush1.msra.mxu0 %v97
    %252 = vmatprep.subr.mxu0 %v102
    %253 = vmatpush1.msra.mxu0 %v101
    %254 = vmatprep.subr.mxu0 %v106
    %255 = vmatpush1.msra.mxu0 %v105
    %256 = vmatprep.subr.mxu0 %v110
    %257 = vmatpush1.msra.mxu0 %v109
    %258 = vmatprep.subr.mxu0 %v114
    %259 = vmatpush1.msra.mxu0 %v113
    %260 = vmatprep.subr.mxu0 %v118
    %261 = vmatpush1.msra.mxu0 %v117
    %262 = vmatprep.subr.mxu0 %v122
    %263 = vmatpush1.msra.mxu0 %v121
    %264 = vmatprep.subr.mxu0 %v126
    %265 = vmatpush1.msra.mxu0 %v125
    %266 = vmatprep.subr.mxu0 %v130
    %267 = vmatpush1.msra.mxu0 %v129
    %268 = vmatprep.subr.mxu0 %v134
    %269 = vmatpush1.msra.mxu0 %v133
    %270 = vmatprep.subr.mxu0 %v138
    %271 = vmatpush1.msra.mxu0 %v137
    %272 = vmatprep.subr.mxu0 %v142
    %273 = vmatpush1.msra.mxu0 %v141
    %274 = vmatprep.subr.mxu0 %v146
    %275 = vmatpush1.msra.mxu0 %v145
    %276 = vmatprep.subr.mxu0 %v150
    %277 = vmatpush1.msra.mxu0 %v149
    %278 = vmatprep.subr.mxu0 %v154
    %279 = vmatpush1.msra.mxu0 %v153
    %280 = vmatprep.subr.mxu0 %v158
    %281 = vmatpush1.msra.mxu0 %v157
    %282 = vmatprep.subr.mxu0 %v162
    %283 = vmatpush1.msra.mxu0 %v161
    %284 = vmatprep.subr.mxu0 %v166
    %285 = vmatpush1.msra.mxu0 %v165
    %286 = vmatprep.subr.mxu0 %v170
    %287 = vmatpush1.msra.mxu0 %v169
    %288 = vmatprep.subr.mxu0 %v174
    %289 = vmatpush1.msra.mxu0 %v173
    %290 = vmatprep.subr.mxu0 %v178
    %291 = vmatpush1.msra.mxu0 %v177
    %292 = vmatprep.subr.mxu0 %v182
    %293 = vmatpush1.msra.mxu0 %v181
    %294 = vmatprep.subr.mxu0 %v186
    %295 = vmatpush1.msra.mxu0 %v185
    %296 = vmatprep.subr.mxu0 %v190
    %297 = vmatpush1.msra.mxu0 %v189
    %298 = vmatprep.subr.mxu0 %v194
    %299 = vmatpush1.msra.mxu0 %v193
    %300 = vmatprep.subr.mxu0 %v198
    %301 = vmatpush1.msra.mxu0 %v197
    %302 = vmatprep.subr.mxu0 %v202
    %303 = vmatpush1.msra.mxu0 %v201
    %304 = vmatprep.subr.mxu0 %v206
    %305 = vmatpush1.msra.mxu0 %v205
    %306 = vmatprep.mubr.f32.mxu0 %v218
    %307 = vmatmul.mubr.f32.gmra.mrb[0].mxu0 %v214
    %v308 = vpop.f32.mrb[0].mxu0
    %v309 = vadd.f32 %v225, %v308
    %v310 = vpop.f32.mrb[0].mxu0
    %v311 = vadd.f32 %v229, %v310
    %312 = vdwg.mxu0
    %313 = vmatprep.subr.mxu0 %v84
    %314 = vmatpush1.msra.mxu0 %v83
    %315 = vmatprep.subr.mxu0 %v88
    %316 = vmatpush1.msra.mxu0 %v87
    %317 = vmatprep.subr.mxu0 %v92
    %318 = vmatpush1.msra.mxu0 %v91
    %319 = vmatprep.subr.mxu0 %v96
    %320 = vmatpush1.msra.mxu0 %v95
    %321 = vmatprep.subr.mxu0 %v100
    %322 = vmatpush1.msra.mxu0 %v99
    %323 = vmatprep.subr.mxu0 %v104
    %324 = vmatpush1.msra.mxu0 %v103
    %325 = vmatprep.subr.mxu0 %v108
    %326 = vmatpush1.msra.mxu0 %v107
    %327 = vmatprep.subr.mxu0 %v112
    %328 = vmatpush1.msra.mxu0 %v111
    %329 = vmatprep.subr.mxu0 %v116
    %330 = vmatpush1.msra.mxu0 %v115
    %331 = vmatprep.subr.mxu0 %v120
    %332 = vmatpush1.msra.mxu0 %v119
    %333 = vmatprep.subr.mxu0 %v124
    %334 = vmatpush1.msra.mxu0 %v123
    %335 = vmatprep.subr.mxu0 %v128
    %336 = vmatpush1.msra.mxu0 %v127
    %337 = vmatprep.subr.mxu0 %v132
    %338 = vmatpush1.msra.mxu0 %v131
    %339 = vmatprep.subr.mxu0 %v136
    %340 = vmatpush1.msra.mxu0 %v135
    %341 = vmatprep.subr.mxu0 %v140
    %342 = vmatpush1.msra.mxu0 %v139
    %343 = vmatprep.subr.mxu0 %v144
    %344 = vmatpush1.msra.mxu0 %v143
    %345 = vmatprep.subr.mxu0 %v148
    %346 = vmatpush1.msra.mxu0 %v147
    %347 = vmatprep.subr.mxu0 %v152
    %348 = vmatpush1.msra.mxu0 %v151
    %349 = vmatprep.subr.mxu0 %v156
    %350 = vmatpush1.msra.mxu0 %v155
    %351 = vmatprep.subr.mxu0 %v160
    %352 = vmatpush1.msra.mxu0 %v159
    %353 = vmatprep.subr.mxu0 %v164
    %354 = vmatpush1.msra.mxu0 %v163
    %355 = vmatprep.subr.mxu0 %v168
    %356 = vmatpush1.msra.mxu0 %v167
    %357 = vmatprep.subr.mxu0 %v172
    %358 = vmatpush1.msra.mxu0 %v171
    %359 = vmatprep.subr.mxu0 %v176
    %360 = vmatpush1.msra.mxu0 %v175
    %361 = vmatprep.subr.mxu0 %v180
    %362 = vmatpush1.msra.mxu0 %v179
    %363 = vmatprep.subr.mxu0 %v184
    %364 = vmatpush1.msra.mxu0 %v183
    %365 = vmatprep.subr.mxu0 %v188
    %366 = vmatpush1.msra.mxu0 %v187
    %367 = vmatprep.subr.mxu0 %v192
    %368 = vmatpush1.msra.mxu0 %v191
    %369 = vmatprep.subr.mxu0 %v196
    %370 = vmatpush1.msra.mxu0 %v195
    %371 = vmatprep.subr.mxu0 %v200
    %372 = vmatpush1.msra.mxu0 %v199
    %373 = vmatprep.subr.mxu0 %v204
    %374 = vmatpush1.msra.mxu0 %v203
    %375 = vmatprep.subr.mxu0 %v208
    %376 = vmatpush1.msra.mxu0 %v207
    %377 = vmatprep.mubr.f32.mxu0 %v218
    %378 = vmatmul.mubr.f32.gmra.mrb[0].mxu0 %v214
    %v379 = vpop.f32.mrb[0].mxu0
    %v380 = vadd.f32 %v233, %v379
    %v381 = vpop.f32.mrb[0].mxu0
    %v382 = vadd.f32 %v237, %v381
    %383 = vdwg.mxu0
    %v384 = vmax.f32 %v309, 0.0
    %v385 = vmax.f32 %v311, 0.0
    %v386 = vmax.f32 %v380, 0.0
    %v387 = vmax.f32 %v382, 0.0
    %v388 = vld [vmem:[#allocation7] sm:$0xff]
    %v389 = vld [vmem:[#allocation7 + $0x8] sm:$0xff]
    %v390 = vld [vmem:[#allocation7 + $0x10] sm:$0xff]
    %v391 = vld [vmem:[#allocation7 + $0x18] sm:$0xff]
    %v392 = vld [vmem:[#allocation7 + $0x20] sm:$0xff]
    %v393 = vld [vmem:[#allocation7 + $0x28] sm:$0xff]
    %v394 = vld [vmem:[#allocation7 + $0x30] sm:$0xff]
    %v395 = vld [vmem:[#allocation7 + $0x38] sm:$0xff]
    %v396 = vld [vmem:[#allocation7 + $0x40] sm:$0xff]
    %v397 = vld [vmem:[#allocation7 + $0x48] sm:$0xff]
    %v398 = vld [vmem:[#allocation7 + $0x50] sm:$0xff]
    %v399 = vld [vmem:[#allocation7 + $0x58] sm:$0xff]
    %v400 = vld [vmem:[#allocation7 + $0x60] sm:$0xff]
    %v401 = vld [vmem:[#allocation7 + $0x68] sm:$0xff]
    %v402 = vld [vmem:[#allocation7 + $0x70] sm:$0xff]
    %v403 = vld [vmem:[#allocation7 + $0x78] sm:$0xff]
    %v404 = vld [vmem:[#allocation7 + $0x80] sm:$0xff]
    %v405 = vld [vmem:[#allocation7 + $0x88] sm:$0xff]
    %v406 = vld [vmem:[#allocation7 + $0x90] sm:$0xff]
    %v407 = vld [vmem:[#allocation7 + $0x98] sm:$0xff]
    %v408 = vld [vmem:[#allocation7 + $0xa0] sm:$0xff]
    %v409 = vld [vmem:[#allocation7 + $0xa8] sm:$0xff]
    %v410 = vld [vmem:[#allocation7 + $0xb0] sm:$0xff]
    %v411 = vld [vmem:[#allocation7 + $0xb8] sm:$0xff]
    %v412 = vld [vmem:[#allocation7 + $0xc0] sm:$0xff]
    %v413 = vld [vmem:[#allocation7 + $0xc8] sm:$0xff]
    %v414 = vld [vmem:[#allocation7 + $0xd0] sm:$0xff]
    %v415 = vld [vmem:[#allocation7 + $0xd8] sm:$0xff]
    %v416 = vld [vmem:[#allocation7 + $0xe0] sm:$0xff]
    %v417 = vld [vmem:[#allocation7 + $0xe8] sm:$0xff]
    %v418 = vld [vmem:[#allocation7 + $0xf0] sm:$0xff]
    %v419 = vld [vmem:[#allocation7 + $0xf8] sm:$0xff]
    %v420 = vld [vmem:[#allocation7 + $0x100] sm:$0xff]
    %v421 = vld [vmem:[#allocation7 + $0x108] sm:$0xff]
    %v422 = vld [vmem:[#allocation7 + $0x110] sm:$0xff]
    %v423 = vld [vmem:[#allocation7 + $0x118] sm:$0xff]
    %v424 = vld [vmem:[#allocation7 + $0x120] sm:$0xff]
    %v425 = vld [vmem:[#allocation7 + $0x128] sm:$0xff]
    %v426 = vld [vmem:[#allocation7 + $0x130] sm:$0xff]
    %v427 = vld [vmem:[#allocation7 + $0x138] sm:$0xff]
    %v428 = vld [vmem:[#allocation7 + $0x140] sm:$0xff]
    %v429 = vld [vmem:[#allocation7 + $0x148] sm:$0xff]
    %v430 = vld [vmem:[#allocation7 + $0x150] sm:$0xff]
    %v431 = vld [vmem:[#allocation7 + $0x158] sm:$0xff]
    %v432 = vld [vmem:[#allocation7 + $0x160] sm:$0xff]
    %v433 = vld [vmem:[#allocation7 + $0x168] sm:$0xff]
    %v434 = vld [vmem:[#allocation7 + $0x170] sm:$0xff]
    %v435 = vld [vmem:[#allocation7 + $0x178] sm:$0xff]
    %v436 = vld [vmem:[#allocation7 + $0x180] sm:$0xff]
    %v437 = vld [vmem:[#allocation7 + $0x188] sm:$0xff]
    %v438 = vld [vmem:[#allocation7 + $0x190] sm:$0xff]
    %v439 = vld [vmem:[#allocation7 + $0x198] sm:$0xff]
    %v440 = vld [vmem:[#allocation7 + $0x1a0] sm:$0xff]
    %v441 = vld [vmem:[#allocation7 + $0x1a8] sm:$0xff]
    %v442 = vld [vmem:[#allocation7 + $0x1b0] sm:$0xff]
    %v443 = vld [vmem:[#allocation7 + $0x1b8] sm:$0xff]
    %v444 = vld [vmem:[#allocation7 + $0x1c0] sm:$0xff]
    %v445 = vld [vmem:[#allocation7 + $0x1c8] sm:$0xff]
    %v446 = vld [vmem:[#allocation7 + $0x1d0] sm:$0xff]
    %v447 = vld [vmem:[#allocation7 + $0x1d8] sm:$0xff]
    %v448 = vld [vmem:[#allocation7 + $0x1e0] sm:$0xff]
    %v449 = vld [vmem:[#allocation7 + $0x1e8] sm:$0xff]
    %v450 = vld [vmem:[#allocation7 + $0x1f0] sm:$0xff]
    %v451 = vld [vmem:[#allocation7 + $0x1f8] sm:$0xff]
    %v452 = vld [vmem:[#allocation7 + $0x200] sm:$0xff]
    %v453 = vld [vmem:[#allocation7 + $0x208] sm:$0xff]
    %v454 = vld [vmem:[#allocation7 + $0x210] sm:$0xff]
    %v455 = vld [vmem:[#allocation7 + $0x218] sm:$0xff]
    %v456 = vld [vmem:[#allocation7 + $0x220] sm:$0xff]
    %v457 = vld [vmem:[#allocation7 + $0x228] sm:$0xff]
    %v458 = vld [vmem:[#allocation7 + $0x230] sm:$0xff]
    %v459 = vld [vmem:[#allocation7 + $0x238] sm:$0xff]
    %v460 = vld [vmem:[#allocation7 + $0x240] sm:$0xff]
    %v461 = vld [vmem:[#allocation7 + $0x248] sm:$0xff]
    %v462 = vld [vmem:[#allocation7 + $0x250] sm:$0xff]
    %v463 = vld [vmem:[#allocation7 + $0x258] sm:$0xff]
    %v464 = vld [vmem:[#allocation7 + $0x260] sm:$0xff]
    %v465 = vld [vmem:[#allocation7 + $0x268] sm:$0xff]
    %v466 = vld [vmem:[#allocation7 + $0x270] sm:$0xff]
    %v467 = vld [vmem:[#allocation7 + $0x278] sm:$0xff]
    %v468 = vld [vmem:[#allocation7 + $0x280] sm:$0xff]
    %v469 = vld [vmem:[#allocation7 + $0x288] sm:$0xff]
    %v470 = vld [vmem:[#allocation7 + $0x290] sm:$0xff]
    %v471 = vld [vmem:[#allocation7 + $0x298] sm:$0xff]
    %v472 = vld [vmem:[#allocation7 + $0x2a0] sm:$0xff]
    %v473 = vld [vmem:[#allocation7 + $0x2a8] sm:$0xff]
    %v474 = vld [vmem:[#allocation7 + $0x2b0] sm:$0xff]
    %v475 = vld [vmem:[#allocation7 + $0x2b8] sm:$0xff]
    %v476 = vld [vmem:[#allocation7 + $0x2c0] sm:$0xff]
    %v477 = vld [vmem:[#allocation7 + $0x2c8] sm:$0xff]
    %v478 = vld [vmem:[#allocation7 + $0x2d0] sm:$0xff]
    %v479 = vld [vmem:[#allocation7 + $0x2d8] sm:$0xff]
    %v480 = vld [vmem:[#allocation7 + $0x2e0] sm:$0xff]
    %v481 = vld [vmem:[#allocation7 + $0x2e8] sm:$0xff]
    %v482 = vld [vmem:[#allocation7 + $0x2f0] sm:$0xff]
    %v483 = vld [vmem:[#allocation7 + $0x2f8] sm:$0xff]
    %v484 = vld [vmem:[#allocation7 + $0x300] sm:$0xff]
    %v485 = vld [vmem:[#allocation7 + $0x308] sm:$0xff]
    %v486 = vld [vmem:[#allocation7 + $0x310] sm:$0xff]
    %v487 = vld [vmem:[#allocation7 + $0x318] sm:$0xff]
    %v488 = vld [vmem:[#allocation7 + $0x320] sm:$0xff]
    %v489 = vld [vmem:[#allocation7 + $0x328] sm:$0xff]
    %v490 = vld [vmem:[#allocation7 + $0x330] sm:$0xff]
    %v491 = vld [vmem:[#allocation7 + $0x338] sm:$0xff]
    %v492 = vld [vmem:[#allocation7 + $0x340] sm:$0xff]
    %v493 = vld [vmem:[#allocation7 + $0x348] sm:$0xff]
    %v494 = vld [vmem:[#allocation7 + $0x350] sm:$0xff]
    %v495 = vld [vmem:[#allocation7 + $0x358] sm:$0xff]
    %v496 = vld [vmem:[#allocation7 + $0x360] sm:$0xff]
    %v497 = vld [vmem:[#allocation7 + $0x368] sm:$0xff]
    %v498 = vld [vmem:[#allocation7 + $0x370] sm:$0xff]
    %v499 = vld [vmem:[#allocation7 + $0x378] sm:$0xff]
    %v500 = vld [vmem:[#allocation7 + $0x380] sm:$0xff]
    %v501 = vld [vmem:[#allocation7 + $0x388] sm:$0xff]
    %v502 = vld [vmem:[#allocation7 + $0x390] sm:$0xff]
    %v503 = vld [vmem:[#allocation7 + $0x398] sm:$0xff]
    %v504 = vld [vmem:[#allocation7 + $0x3a0] sm:$0xff]
    %v505 = vld [vmem:[#allocation7 + $0x3a8] sm:$0xff]
    %v506 = vld [vmem:[#allocation7 + $0x3b0] sm:$0xff]
    %v507 = vld [vmem:[#allocation7 + $0x3b8] sm:$0xff]
    %v508 = vld [vmem:[#allocation7 + $0x3c0] sm:$0xff]
    %v509 = vld [vmem:[#allocation7 + $0x3c8] sm:$0xff]
    %v510 = vld [vmem:[#allocation7 + $0x3d0] sm:$0xff]
    %v511 = vld [vmem:[#allocation7 + $0x3d8] sm:$0xff]
    %v512 = vld [vmem:[#allocation7 + $0x3e0] sm:$0xff]
    %v513 = vld [vmem:[#allocation7 + $0x3e8] sm:$0xff]
    %v514 = vld [vmem:[#allocation7 + $0x3f0] sm:$0xff]
    %v515 = vld [vmem:[#allocation7 + $0x3f8] sm:$0xff]
    %v516 = vld [vmem:[#allocation7 + $0x400] sm:$0xff]
    %v517 = vld [vmem:[#allocation7 + $0x408] sm:$0xff]
    %v518 = vld [vmem:[#allocation7 + $0x410] sm:$0xff]
    %v519 = vld [vmem:[#allocation7 + $0x418] sm:$0xff]
    %v520 = vld [vmem:[#allocation7 + $0x420] sm:$0xff]
    %v521 = vld [vmem:[#allocation7 + $0x428] sm:$0xff]
    %v522 = vld [vmem:[#allocation7 + $0x430] sm:$0xff]
    %v523 = vld [vmem:[#allocation7 + $0x438] sm:$0xff]
    %v524 = vld [vmem:[#allocation7 + $0x440] sm:$0xff]
    %v525 = vld [vmem:[#allocation7 + $0x448] sm:$0xff]
    %v526 = vld [vmem:[#allocation7 + $0x450] sm:$0xff]
    %v527 = vld [vmem:[#allocation7 + $0x458] sm:$0xff]
    %v528 = vld [vmem:[#allocation7 + $0x460] sm:$0xff]
    %v529 = vld [vmem:[#allocation7 + $0x468] sm:$0xff]
    %v530 = vld [vmem:[#allocation7 + $0x470] sm:$0xff]
    %v531 = vld [vmem:[#allocation7 + $0x478] sm:$0xff]
    %v532 = vld [vmem:[#allocation7 + $0x480] sm:$0xff]
    %v533 = vld [vmem:[#allocation7 + $0x488] sm:$0xff]
    %v534 = vld [vmem:[#allocation7 + $0x490] sm:$0xff]
    %v535 = vld [vmem:[#allocation7 + $0x498] sm:$0xff]
    %v536 = vld [vmem:[#allocation7 + $0x4a0] sm:$0xff]
    %v537 = vld [vmem:[#allocation7 + $0x4a8] sm:$0xff]
    %v538 = vld [vmem:[#allocation7 + $0x4b0] sm:$0xff]
    %v539 = vld [vmem:[#allocation7 + $0x4b8] sm:$0xff]
    %v540 = vld [vmem:[#allocation7 + $0x4c0] sm:$0xff]
    %v541 = vld [vmem:[#allocation7 + $0x4c8] sm:$0xff]
    %v542 = vld [vmem:[#allocation7 + $0x4d0] sm:$0xff]
    %v543 = vld [vmem:[#allocation7 + $0x4d8] sm:$0xff]
    %v544 = vld [vmem:[#allocation7 + $0x4e0] sm:$0xff]
    %v545 = vld [vmem:[#allocation7 + $0x4e8] sm:$0xff]
    %v546 = vld [vmem:[#allocation7 + $0x4f0] sm:$0xff]
    %v547 = vld [vmem:[#allocation7 + $0x4f8] sm:$0xff]
    %v548 = vld [vmem:[#allocation7 + $0x500] sm:$0xff]
    %v549 = vld [vmem:[#allocation7 + $0x508] sm:$0xff]
    %v550 = vld [vmem:[#allocation7 + $0x510] sm:$0xff]
    %v551 = vld [vmem:[#allocation7 + $0x518] sm:$0xff]
    %v552 = vld [vmem:[#allocation7 + $0x520] sm:$0xff]
    %v553 = vld [vmem:[#allocation7 + $0x528] sm:$0xff]
    %v554 = vld [vmem:[#allocation7 + $0x530] sm:$0xff]
    %v555 = vld [vmem:[#allocation7 + $0x538] sm:$0xff]
    %v556 = vld [vmem:[#allocation7 + $0x540] sm:$0xff]
    %v557 = vld [vmem:[#allocation7 + $0x548] sm:$0xff]
    %v558 = vld [vmem:[#allocation7 + $0x550] sm:$0xff]
    %v559 = vld [vmem:[#allocation7 + $0x558] sm:$0xff]
    %v560 = vld [vmem:[#allocation7 + $0x560] sm:$0xff]
    %v561 = vld [vmem:[#allocation7 + $0x568] sm:$0xff]
    %v562 = vld [vmem:[#allocation7 + $0x570] sm:$0xff]
    %v563 = vld [vmem:[#allocation7 + $0x578] sm:$0xff]
    %v564 = vld [vmem:[#allocation7 + $0x580] sm:$0xff]
    %v565 = vld [vmem:[#allocation7 + $0x588] sm:$0xff]
    %v566 = vld [vmem:[#allocation7 + $0x590] sm:$0xff]
    %v567 = vld [vmem:[#allocation7 + $0x598] sm:$0xff]
    %v568 = vld [vmem:[#allocation7 + $0x5a0] sm:$0xff]
    %v569 = vld [vmem:[#allocation7 + $0x5a8] sm:$0xff]
    %v570 = vld [vmem:[#allocation7 + $0x5b0] sm:$0xff]
    %v571 = vld [vmem:[#allocation7 + $0x5b8] sm:$0xff]
    %v572 = vld [vmem:[#allocation7 + $0x5c0] sm:$0xff]
    %v573 = vld [vmem:[#allocation7 + $0x5c8] sm:$0xff]
    %v574 = vld [vmem:[#allocation7 + $0x5d0] sm:$0xff]
    %v575 = vld [vmem:[#allocation7 + $0x5d8] sm:$0xff]
    %v576 = vld [vmem:[#allocation7 + $0x5e0] sm:$0xff]
    %v577 = vld [vmem:[#allocation7 + $0x5e8] sm:$0xff]
    %v578 = vld [vmem:[#allocation7 + $0x5f0] sm:$0xff]
    %v579 = vld [vmem:[#allocation7 + $0x5f8] sm:$0xff]
    %v580 = vld [vmem:[#allocation7 + $0x600] sm:$0xff]
    %v581 = vld [vmem:[#allocation7 + $0x608] sm:$0xff]
    %v582 = vld [vmem:[#allocation7 + $0x610] sm:$0xff]
    %v583 = vld [vmem:[#allocation7 + $0x618] sm:$0xff]
    %v584 = vld [vmem:[#allocation7 + $0x620] sm:$0xff]
    %v585 = vld [vmem:[#allocation7 + $0x628] sm:$0xff]
    %v586 = vld [vmem:[#allocation7 + $0x630] sm:$0xff]
    %v587 = vld [vmem:[#allocation7 + $0x638] sm:$0xff]
    %v588 = vld [vmem:[#allocation7 + $0x640] sm:$0xff]
    %v589 = vld [vmem:[#allocation7 + $0x648] sm:$0xff]
    %v590 = vld [vmem:[#allocation7 + $0x650] sm:$0xff]
    %v591 = vld [vmem:[#allocation7 + $0x658] sm:$0xff]
    %v592 = vld [vmem:[#allocation7 + $0x660] sm:$0xff]
    %v593 = vld [vmem:[#allocation7 + $0x668] sm:$0xff]
    %v594 = vld [vmem:[#allocation7 + $0x670] sm:$0xff]
    %v595 = vld [vmem:[#allocation7 + $0x678] sm:$0xff]
    %v596 = vld [vmem:[#allocation7 + $0x680] sm:$0xff]
    %v597 = vld [vmem:[#allocation7 + $0x688] sm:$0xff]
    %v598 = vld [vmem:[#allocation7 + $0x690] sm:$0xff]
    %v599 = vld [vmem:[#allocation7 + $0x698] sm:$0xff]
    %v600 = vld [vmem:[#allocation7 + $0x6a0] sm:$0xff]
    %v601 = vld [vmem:[#allocation7 + $0x6a8] sm:$0xff]
    %v602 = vld [vmem:[#allocation7 + $0x6b0] sm:$0xff]
    %v603 = vld [vmem:[#allocation7 + $0x6b8] sm:$0xff]
    %v604 = vld [vmem:[#allocation7 + $0x6c0] sm:$0xff]
    %v605 = vld [vmem:[#allocation7 + $0x6c8] sm:$0xff]
    %v606 = vld [vmem:[#allocation7 + $0x6d0] sm:$0xff]
    %v607 = vld [vmem:[#allocation7 + $0x6d8] sm:$0xff]
    %v608 = vld [vmem:[#allocation7 + $0x6e0] sm:$0xff]
    %v609 = vld [vmem:[#allocation7 + $0x6e8] sm:$0xff]
    %v610 = vld [vmem:[#allocation7 + $0x6f0] sm:$0xff]
    %v611 = vld [vmem:[#allocation7 + $0x6f8] sm:$0xff]
    %v612 = vld [vmem:[#allocation7 + $0x700] sm:$0xff]
    %v613 = vld [vmem:[#allocation7 + $0x708] sm:$0xff]
    %v614 = vld [vmem:[#allocation7 + $0x710] sm:$0xff]
    %v615 = vld [vmem:[#allocation7 + $0x718] sm:$0xff]
    %v616 = vld [vmem:[#allocation7 + $0x720] sm:$0xff]
    %v617 = vld [vmem:[#allocation7 + $0x728] sm:$0xff]
    %v618 = vld [vmem:[#allocation7 + $0x730] sm:$0xff]
    %v619 = vld [vmem:[#allocation7 + $0x738] sm:$0xff]
    %v620 = vld [vmem:[#allocation7 + $0x740] sm:$0xff]
    %v621 = vld [vmem:[#allocation7 + $0x748] sm:$0xff]
    %v622 = vld [vmem:[#allocation7 + $0x750] sm:$0xff]
    %v623 = vld [vmem:[#allocation7 + $0x758] sm:$0xff]
    %v624 = vld [vmem:[#allocation7 + $0x760] sm:$0xff]
    %v625 = vld [vmem:[#allocation7 + $0x768] sm:$0xff]
    %v626 = vld [vmem:[#allocation7 + $0x770] sm:$0xff]
    %v627 = vld [vmem:[#allocation7 + $0x778] sm:$0xff]
    %v628 = vld [vmem:[#allocation7 + $0x780] sm:$0xff]
    %v629 = vld [vmem:[#allocation7 + $0x788] sm:$0xff]
    %v630 = vld [vmem:[#allocation7 + $0x790] sm:$0xff]
    %v631 = vld [vmem:[#allocation7 + $0x798] sm:$0xff]
    %v632 = vld [vmem:[#allocation7 + $0x7a0] sm:$0xff]
    %v633 = vld [vmem:[#allocation7 + $0x7a8] sm:$0xff]
    %v634 = vld [vmem:[#allocation7 + $0x7b0] sm:$0xff]
    %v635 = vld [vmem:[#allocation7 + $0x7b8] sm:$0xff]
    %v636 = vld [vmem:[#allocation7 + $0x7c0] sm:$0xff]
    %v637 = vld [vmem:[#allocation7 + $0x7c8] sm:$0xff]
    %v638 = vld [vmem:[#allocation7 + $0x7d0] sm:$0xff]
    %v639 = vld [vmem:[#allocation7 + $0x7d8] sm:$0xff]
    %v640 = vld [vmem:[#allocation7 + $0x7e0] sm:$0xff]
    %v641 = vld [vmem:[#allocation7 + $0x7e8] sm:$0xff]
    %v642 = vld [vmem:[#allocation7 + $0x7f0] sm:$0xff]
    %v643 = vld [vmem:[#allocation7 + $0x7f8] sm:$0xff]
    %v644 = vld [vmem:[%s4] sm:$0xf]
    %v646 = vlaneseq
    %v647 = vshrl.u32 %v646, 7
    %v648 = vsub.s32 0, %v647
    %v649 = vrot.slane %v644, %v648
    %v650 = vlaneseq
    %v651 = vshrl.u32 %v650, 7
    %v652 = vsub.s32 1, %v651
    %v653 = vrot.slane %v644, %v652
    %v654 = vlaneseq
    %v655 = vshrl.u32 %v654, 7
    %v656 = vsub.s32 2, %v655
    %v657 = vrot.slane %v644, %v656
    %v658 = vlaneseq
    %v659 = vshrl.u32 %v658, 7
    %v660 = vsub.s32 3, %v659
    %v661 = vrot.slane %v644, %v660
    %666 = vmatprep.subr.mxu0 %v389
    %667 = vmatpush1.msra.mxu0 %v388
    %668 = vmatprep.subr.mxu0 %v393
    %669 = vmatpush1.msra.mxu0 %v392
    %670 = vmatprep.subr.mxu0 %v397
    %671 = vmatpush1.msra.mxu0 %v396
    %672 = vmatprep.subr.mxu0 %v401
    %673 = vmatpush1.msra.mxu0 %v400
    %674 = vmatprep.subr.mxu0 %v405
    %675 = vmatpush1.msra.mxu0 %v404
    %676 = vmatprep.subr.mxu0 %v409
    %677 = vmatpush1.msra.mxu0 %v408
    %678 = vmatprep.subr.mxu0 %v413
    %679 = vmatpush1.msra.mxu0 %v412
    %680 = vmatprep.subr.mxu0 %v417
    %681 = vmatpush1.msra.mxu0 %v416
    %682 = vmatprep.subr.mxu0 %v421
    %683 = vmatpush1.msra.mxu0 %v420
    %684 = vmatprep.subr.mxu0 %v425
    %685 = vmatpush1.msra.mxu0 %v424
    %686 = vmatprep.subr.mxu0 %v429
    %687 = vmatpush1.msra.mxu0 %v428
    %688 = vmatprep.subr.mxu0 %v433
    %689 = vmatpush1.msra.mxu0 %v432
    %690 = vmatprep.subr.mxu0 %v437
    %691 = vmatpush1.msra.mxu0 %v436
    %692 = vmatprep.subr.mxu0 %v441
    %693 = vmatpush1.msra.mxu0 %v440
    %694 = vmatprep.subr.mxu0 %v445
    %695 = vmatpush1.msra.mxu0 %v444
    %696 = vmatprep.subr.mxu0 %v449
    %697 = vmatpush1.msra.mxu0 %v448
    %698 = vmatprep.subr.mxu0 %v453
    %699 = vmatpush1.msra.mxu0 %v452
    %700 = vmatprep.subr.mxu0 %v457
    %701 = vmatpush1.msra.mxu0 %v456
    %702 = vmatprep.subr.mxu0 %v461
    %703 = vmatpush1.msra.mxu0 %v460
    %704 = vmatprep.subr.mxu0 %v465
    %705 = vmatpush1.msra.mxu0 %v464
    %706 = vmatprep.subr.mxu0 %v469
    %707 = vmatpush1.msra.mxu0 %v468
    %708 = vmatprep.subr.mxu0 %v473
    %709 = vmatpush1.msra.mxu0 %v472
    %710 = vmatprep.subr.mxu0 %v477
    %711 = vmatpush1.msra.mxu0 %v476
    %712 = vmatprep.subr.mxu0 %v481
    %713 = vmatpush1.msra.mxu0 %v480
    %714 = vmatprep.subr.mxu0 %v485
    %715 = vmatpush1.msra.mxu0 %v484
    %716 = vmatprep.subr.mxu0 %v489
    %717 = vmatpush1.msra.mxu0 %v488
    %718 = vmatprep.subr.mxu0 %v493
    %719 = vmatpush1.msra.mxu0 %v492
    %720 = vmatprep.subr.mxu0 %v497
    %721 = vmatpush1.msra.mxu0 %v496
    %722 = vmatprep.subr.mxu0 %v501
    %723 = vmatpush1.msra.mxu0 %v500
    %724 = vmatprep.subr.mxu0 %v505
    %725 = vmatpush1.msra.mxu0 %v504
    %726 = vmatprep.subr.mxu0 %v509
    %727 = vmatpush1.msra.mxu0 %v508
    %728 = vmatprep.subr.mxu0 %v513
    %729 = vmatpush1.msra.mxu0 %v512
    %730 = vmatprep.mubr.f32.mxu0 %v385
    %731 = vmatmul.mubr.f32.gmra.mrb[0].mxu0 %v384
    %v732 = vpop.f32.mrb[0].mxu0
    %v733 = vadd.f32 %v649, %v732
    %v734 = vpop.f32.mrb[0].mxu0
    %v735 = vadd.f32 %v653, %v734
    %736 = vdwg.mxu0
    %737 = vmatprep.subr.mxu0 %v517
    %738 = vmatpush1.msra.mxu0 %v516
    %739 = vmatprep.subr.mxu0 %v521
    %740 = vmatpush1.msra.mxu0 %v520
    %741 = vmatprep.subr.mxu0 %v525
    %742 = vmatpush1.msra.mxu0 %v524
    %743 = vmatprep.subr.mxu0 %v529
    %744 = vmatpush1.msra.mxu0 %v528
    %745 = vmatprep.subr.mxu0 %v533
    %746 = vmatpush1.msra.mxu0 %v532
    %747 = vmatprep.subr.mxu0 %v537
    %748 = vmatpush1.msra.mxu0 %v536
    %749 = vmatprep.subr.mxu0 %v541
    %750 = vmatpush1.msra.mxu0 %v540
    %751 = vmatprep.subr.mxu0 %v545
    %752 = vmatpush1.msra.mxu0 %v544
    %753 = vmatprep.subr.mxu0 %v549
    %754 = vmatpush1.msra.mxu0 %v548
    %755 = vmatprep.subr.mxu0 %v553
    %756 = vmatpush1.msra.mxu0 %v552
    %757 = vmatprep.subr.mxu0 %v557
    %758 = vmatpush1.msra.mxu0 %v556
    %759 = vmatprep.subr.mxu0 %v561
    %760 = vmatpush1.msra.mxu0 %v560
    %761 = vmatprep.subr.mxu0 %v565
    %762 = vmatpush1.msra.mxu0 %v564
    %763 = vmatprep.subr.mxu0 %v569
    %764 = vmatpush1.msra.mxu0 %v568
    %765 = vmatprep.subr.mxu0 %v573
    %766 = vmatpush1.msra.mxu0 %v572
    %767 = vmatprep.subr.mxu0 %v577
    %768 = vmatpush1.msra.mxu0 %v576
    %769 = vmatprep.subr.mxu0 %v581
    %770 = vmatpush1.msra.mxu0 %v580
    %771 = vmatprep.subr.mxu0 %v585
    %772 = vmatpush1.msra.mxu0 %v584
    %773 = vmatprep.subr.mxu0 %v589
    %774 = vmatpush1.msra.mxu0 %v588
    %775 = vmatprep.subr.mxu0 %v593
    %776 = vmatpush1.msra.mxu0 %v592
    %777 = vmatprep.subr.mxu0 %v597
    %778 = vmatpush1.msra.mxu0 %v596
    %779 = vmatprep.subr.mxu0 %v601
    %780 = vmatpush1.msra.mxu0 %v600
    %781 = vmatprep.subr.mxu0 %v605
    %782 = vmatpush1.msra.mxu0 %v604
    %783 = vmatprep.subr.mxu0 %v609
    %784 = vmatpush1.msra.mxu0 %v608
    %785 = vmatprep.subr.mxu0 %v613
    %786 = vmatpush1.msra.mxu0 %v612
    %787 = vmatprep.subr.mxu0 %v617
    %788 = vmatpush1.msra.mxu0 %v616
    %789 = vmatprep.subr.mxu0 %v621
    %790 = vmatpush1.msra.mxu0 %v620
    %791 = vmatprep.subr.mxu0 %v625
    %792 = vmatpush1.msra.mxu0 %v624
    %793 = vmatprep.subr.mxu0 %v629
    %794 = vmatpush1.msra.mxu0 %v628
    %795 = vmatprep.subr.mxu0 %v633
    %796 = vmatpush1.msra.mxu0 %v632
    %797 = vmatprep.subr.mxu0 %v637
    %798 = vmatpush1.msra.mxu0 %v636
    %799 = vmatprep.subr.mxu0 %v641
    %800 = vmatpush1.msra.mxu0 %v640
    %801 = vmatprep.mubr.f32.mxu0 %v387
    %802 = vmatmul.mubr.f32.gmra.mrb[0].mxu0 %v386
    %v803 = vpop.f32.mrb[0].mxu0
    %v804 = vadd.f32 %v733, %v803
    %v805 = vpop.f32.mrb[0].mxu0
    %v806 = vadd.f32 %v735, %v805
    %807 = vdwg.mxu0
    %808 = vmatprep.subr.mxu0 %v391
    %809 = vmatpush1.msra.mxu0 %v390
    %810 = vmatprep.subr.mxu0 %v395
    %811 = vmatpush1.msra.mxu0 %v394
    %812 = vmatprep.subr.mxu0 %v399
    %813 = vmatpush1.msra.mxu0 %v398
    %814 = vmatprep.subr.mxu0 %v403
    %815 = vmatpush1.msra.mxu0 %v402
    %816 = vmatprep.subr.mxu0 %v407
    %817 = vmatpush1.msra.mxu0 %v406
    %818 = vmatprep.subr.mxu0 %v411
    %819 = vmatpush1.msra.mxu0 %v410
    %820 = vmatprep.subr.mxu0 %v415
    %821 = vmatpush1.msra.mxu0 %v414
    %822 = vmatprep.subr.mxu0 %v419
    %823 = vmatpush1.msra.mxu0 %v418
    %824 = vmatprep.subr.mxu0 %v423
    %825 = vmatpush1.msra.mxu0 %v422
    %826 = vmatprep.subr.mxu0 %v427
    %827 = vmatpush1.msra.mxu0 %v426
    %828 = vmatprep.subr.mxu0 %v431
    %829 = vmatpush1.msra.mxu0 %v430
    %830 = vmatprep.subr.mxu0 %v435
    %831 = vmatpush1.msra.mxu0 %v434
    %832 = vmatprep.subr.mxu0 %v439
    %833 = vmatpush1.msra.mxu0 %v438
    %834 = vmatprep.subr.mxu0 %v443
    %835 = vmatpush1.msra.mxu0 %v442
    %836 = vmatprep.subr.mxu0 %v447
    %837 = vmatpush1.msra.mxu0 %v446
    %838 = vmatprep.subr.mxu0 %v451
    %839 = vmatpush1.msra.mxu0 %v450
    %840 = vmatprep.subr.mxu0 %v455
    %841 = vmatpush1.msra.mxu0 %v454
    %842 = vmatprep.subr.mxu0 %v459
    %843 = vmatpush1.msra.mxu0 %v458
    %844 = vmatprep.subr.mxu0 %v463
    %845 = vmatpush1.msra.mxu0 %v462
    %846 = vmatprep.subr.mxu0 %v467
    %847 = vmatpush1.msra.mxu0 %v466
    %848 = vmatprep.subr.mxu0 %v471
    %849 = vmatpush1.msra.mxu0 %v470
    %850 = vmatprep.subr.mxu0 %v475
    %851 = vmatpush1.msra.mxu0 %v474
    %852 = vmatprep.subr.mxu0 %v479
    %853 = vmatpush1.msra.mxu0 %v478
    %854 = vmatprep.subr.mxu0 %v483
    %855 = vmatpush1.msra.mxu0 %v482
    %856 = vmatprep.subr.mxu0 %v487
    %857 = vmatpush1.msra.mxu0 %v486
    %858 = vmatprep.subr.mxu0 %v491
    %859 = vmatpush1.msra.mxu0 %v490
    %860 = vmatprep.subr.mxu0 %v495
    %861 = vmatpush1.msra.mxu0 %v494
    %862 = vmatprep.subr.mxu0 %v499
    %863 = vmatpush1.msra.mxu0 %v498
    %864 = vmatprep.subr.mxu0 %v503
    %865 = vmatpush1.msra.mxu0 %v502
    %866 = vmatprep.subr.mxu0 %v507
    %867 = vmatpush1.msra.mxu0 %v506
    %868 = vmatprep.subr.mxu0 %v511
    %869 = vmatpush1.msra.mxu0 %v510
    %870 = vmatprep.subr.mxu0 %v515
    %871 = vmatpush1.msra.mxu0 %v514
    %872 = vmatprep.mubr.f32.mxu0 %v385
    %873 = vmatmul.mubr.f32.gmra.mrb[0].mxu0 %v384
    %v874 = vpop.f32.mrb[0].mxu0
    %v875 = vadd.f32 %v657, %v874
    %v876 = vpop.f32.mrb[0].mxu0
    %v877 = vadd.f32 %v661, %v876
    %878 = vdwg.mxu0
    %879 = vmatprep.subr.mxu0 %v519
    %880 = vmatpush1.msra.mxu0 %v518
    %881 = vmatprep.subr.mxu0 %v523
    %882 = vmatpush1.msra.mxu0 %v522
    %883 = vmatprep.subr.mxu0 %v527
    %884 = vmatpush1.msra.mxu0 %v526
    %885 = vmatprep.subr.mxu0 %v531
    %886 = vmatpush1.msra.mxu0 %v530
    %887 = vmatprep.subr.mxu0 %v535
    %888 = vmatpush1.msra.mxu0 %v534
    %889 = vmatprep.subr.mxu0 %v539
    %890 = vmatpush1.msra.mxu0 %v538
    %891 = vmatprep.subr.mxu0 %v543
    %892 = vmatpush1.msra.mxu0 %v542
    %893 = vmatprep.subr.mxu0 %v547
    %894 = vmatpush1.msra.mxu0 %v546
    %895 = vmatprep.subr.mxu0 %v551
    %896 = vmatpush1.msra.mxu0 %v550
    %897 = vmatprep.subr.mxu0 %v555
    %898 = vmatpush1.msra.mxu0 %v554
    %899 = vmatprep.subr.mxu0 %v559
    %900 = vmatpush1.msra.mxu0 %v558
    %901 = vmatprep.subr.mxu0 %v563
    %902 = vmatpush1.msra.mxu0 %v562
    %903 = vmatprep.subr.mxu0 %v567
    %904 = vmatpush1.msra.mxu0 %v566
    %905 = vmatprep.subr.mxu0 %v571
    %906 = vmatpush1.msra.mxu0 %v570
    %907 = vmatprep.subr.mxu0 %v575
    %908 = vmatpush1.msra.mxu0 %v574
    %909 = vmatprep.subr.mxu0 %v579
    %910 = vmatpush1.msra.mxu0 %v578
    %911 = vmatprep.subr.mxu0 %v583
    %912 = vmatpush1.msra.mxu0 %v582
    %913 = vmatprep.subr.mxu0 %v587
    %914 = vmatpush1.msra.mxu0 %v586
    %915 = vmatprep.subr.mxu0 %v591
    %916 = vmatpush1.msra.mxu0 %v590
    %917 = vmatprep.subr.mxu0 %v595
    %918 = vmatpush1.msra.mxu0 %v594
    %919 = vmatprep.subr.mxu0 %v599
    %920 = vmatpush1.msra.mxu0 %v598
    %921 = vmatprep.subr.mxu0 %v603
    %922 = vmatpush1.msra.mxu0 %v602
    %923 = vmatprep.subr.mxu0 %v607
    %924 = vmatpush1.msra.mxu0 %v606
    %925 = vmatprep.subr.mxu0 %v611
    %926 = vmatpush1.msra.mxu0 %v610
    %927 = vmatprep.subr.mxu0 %v615
    %928 = vmatpush1.msra.mxu0 %v614
    %929 = vmatprep.subr.mxu0 %v619
    %930 = vmatpush1.msra.mxu0 %v618
    %931 = vmatprep.subr.mxu0 %v623
    %932 = vmatpush1.msra.mxu0 %v622
    %933 = vmatprep.subr.mxu0 %v627
    %934 = vmatpush1.msra.mxu0 %v626
    %935 = vmatprep.subr.mxu0 %v631
    %936 = vmatpush1.msra.mxu0 %v630
    %937 = vmatprep.subr.mxu0 %v635
    %938 = vmatpush1.msra.mxu0 %v634
    %939 = vmatprep.subr.mxu0 %v639
    %940 = vmatpush1.msra.mxu0 %v638
    %941 = vmatprep.subr.mxu0 %v643
    %942 = vmatpush1.msra.mxu0 %v642
    %943 = vmatprep.mubr.f32.mxu0 %v387
    %944 = vmatmul.mubr.f32.gmra.mrb[0].mxu0 %v386
    %v945 = vpop.f32.mrb[0].mxu0
    %v946 = vadd.f32 %v875, %v945
    %v947 = vpop.f32.mrb[0].mxu0
    %v948 = vadd.f32 %v877, %v947
    %949 = vdwg.mxu0
    %v950 = vmax.f32 %v804, 0.0
    %v951 = vmax.f32 %v806, 0.0
    %v952 = vmax.f32 %v946, 0.0
    %v953 = vmax.f32 %v948, 0.0
    %v954 = vld [vmem:[#allocation8] sm:$0xff]
    %v955 = vld [vmem:[#allocation8 + $0x8] sm:$0xff]
    %v956 = vld [vmem:[#allocation8 + $0x10] sm:$0xff]
    %v957 = vld [vmem:[#allocation8 + $0x18] sm:$0xff]
    %v958 = vld [vmem:[#allocation8 + $0x20] sm:$0xff]
    %v959 = vld [vmem:[#allocation8 + $0x28] sm:$0xff]
    %v960 = vld [vmem:[#allocation8 + $0x30] sm:$0xff]
    %v961 = vld [vmem:[#allocation8 + $0x38] sm:$0xff]
    %v962 = vld [vmem:[#allocation8 + $0x40] sm:$0xff]
    %v963 = vld [vmem:[#allocation8 + $0x48] sm:$0xff]
    %v964 = vld [vmem:[#allocation8 + $0x50] sm:$0xff]
    %v965 = vld [vmem:[#allocation8 + $0x58] sm:$0xff]
    %v966 = vld [vmem:[#allocation8 + $0x60] sm:$0xff]
    %v967 = vld [vmem:[#allocation8 + $0x68] sm:$0xff]
    %v968 = vld [vmem:[#allocation8 + $0x70] sm:$0xff]
    %v969 = vld [vmem:[#allocation8 + $0x78] sm:$0xff]
    %v970 = vld [vmem:[#allocation8 + $0x80] sm:$0xff]
    %v971 = vld [vmem:[#allocation8 + $0x88] sm:$0xff]
    %v972 = vld [vmem:[#allocation8 + $0x90] sm:$0xff]
    %v973 = vld [vmem:[#allocation8 + $0x98] sm:$0xff]
    %v974 = vld [vmem:[#allocation8 + $0xa0] sm:$0xff]
    %v975 = vld [vmem:[#allocation8 + $0xa8] sm:$0xff]
    %v976 = vld [vmem:[#allocation8 + $0xb0] sm:$0xff]
    %v977 = vld [vmem:[#allocation8 + $0xb8] sm:$0xff]
    %v978 = vld [vmem:[#allocation8 + $0xc0] sm:$0xff]
    %v979 = vld [vmem:[#allocation8 + $0xc8] sm:$0xff]
    %v980 = vld [vmem:[#allocation8 + $0xd0] sm:$0xff]
    %v981 = vld [vmem:[#allocation8 + $0xd8] sm:$0xff]
    %v982 = vld [vmem:[#allocation8 + $0xe0] sm:$0xff]
    %v983 = vld [vmem:[#allocation8 + $0xe8] sm:$0xff]
    %v984 = vld [vmem:[#allocation8 + $0xf0] sm:$0xff]
    %v985 = vld [vmem:[#allocation8 + $0xf8] sm:$0xff]
    %v986 = vld [vmem:[#allocation8 + $0x100] sm:$0xff]
    %v987 = vld [vmem:[#allocation8 + $0x108] sm:$0xff]
    %v988 = vld [vmem:[#allocation8 + $0x110] sm:$0xff]
    %v989 = vld [vmem:[#allocation8 + $0x118] sm:$0xff]
    %v990 = vld [vmem:[#allocation8 + $0x120] sm:$0xff]
    %v991 = vld [vmem:[#allocation8 + $0x128] sm:$0xff]
    %v992 = vld [vmem:[#allocation8 + $0x130] sm:$0xff]
    %v993 = vld [vmem:[#allocation8 + $0x138] sm:$0xff]
    %v994 = vld [vmem:[#allocation8 + $0x140] sm:$0xff]
    %v995 = vld [vmem:[#allocation8 + $0x148] sm:$0xff]
    %v996 = vld [vmem:[#allocation8 + $0x150] sm:$0xff]
    %v997 = vld [vmem:[#allocation8 + $0x158] sm:$0xff]
    %v998 = vld [vmem:[#allocation8 + $0x160] sm:$0xff]
    %v999 = vld [vmem:[#allocation8 + $0x168] sm:$0xff]
    %v1000 = vld [vmem:[#allocation8 + $0x170] sm:$0xff]
    %v1001 = vld [vmem:[#allocation8 + $0x178] sm:$0xff]
    %v1002 = vld [vmem:[#allocation8 + $0x180] sm:$0xff]
    %v1003 = vld [vmem:[#allocation8 + $0x188] sm:$0xff]
    %v1004 = vld [vmem:[#allocation8 + $0x190] sm:$0xff]
    %v1005 = vld [vmem:[#allocation8 + $0x198] sm:$0xff]
    %v1006 = vld [vmem:[#allocation8 + $0x1a0] sm:$0xff]
    %v1007 = vld [vmem:[#allocation8 + $0x1a8] sm:$0xff]
    %v1008 = vld [vmem:[#allocation8 + $0x1b0] sm:$0xff]
    %v1009 = vld [vmem:[#allocation8 + $0x1b8] sm:$0xff]
    %v1010 = vld [vmem:[#allocation8 + $0x1c0] sm:$0xff]
    %v1011 = vld [vmem:[#allocation8 + $0x1c8] sm:$0xff]
    %v1012 = vld [vmem:[#allocation8 + $0x1d0] sm:$0xff]
    %v1013 = vld [vmem:[#allocation8 + $0x1d8] sm:$0xff]
    %v1014 = vld [vmem:[#allocation8 + $0x1e0] sm:$0xff]
    %v1015 = vld [vmem:[#allocation8 + $0x1e8] sm:$0xff]
    %v1016 = vld [vmem:[#allocation8 + $0x1f0] sm:$0xff]
    %v1017 = vld [vmem:[#allocation8 + $0x1f8] sm:$0xff]
    %v1018 = vld [vmem:[%s6] sm:$0x1]
    %1019 = vmatprep.subr.mxu0 0.0
    %1020 = vmatpush1.msra.mxu0 %v954
    %1021 = vmatprep.subr.mxu0 0.0
    %1022 = vmatpush1.msra.mxu0 %v955
    %1023 = vmatprep.subr.mxu0 0.0
    %1024 = vmatpush1.msra.mxu0 %v956
    %1025 = vmatprep.subr.mxu0 0.0
    %1026 = vmatpush1.msra.mxu0 %v957
    %1027 = vmatprep.subr.mxu0 0.0
    %1028 = vmatpush1.msra.mxu0 %v958
    %1029 = vmatprep.subr.mxu0 0.0
    %1030 = vmatpush1.msra.mxu0 %v959
    %1031 = vmatprep.subr.mxu0 0.0
    %1032 = vmatpush1.msra.mxu0 %v960
    %1033 = vmatprep.subr.mxu0 0.0
    %1034 = vmatpush1.msra.mxu0 %v961
    %1035 = vmatprep.subr.mxu0 0.0
    %1036 = vmatpush1.msra.mxu0 %v962
    %1037 = vmatprep.subr.mxu0 0.0
    %1038 = vmatpush1.msra.mxu0 %v963
    %1039 = vmatprep.subr.mxu0 0.0
    %1040 = vmatpush1.msra.mxu0 %v964
    %1041 = vmatprep.subr.mxu0 0.0
    %1042 = vmatpush1.msra.mxu0 %v965
    %1043 = vmatprep.subr.mxu0 0.0
    %1044 = vmatpush1.msra.mxu0 %v966
    %1045 = vmatprep.subr.mxu0 0.0
    %1046 = vmatpush1.msra.mxu0 %v967
    %1047 = vmatprep.subr.mxu0 0.0
    %1048 = vmatpush1.msra.mxu0 %v968
    %1049 = vmatprep.subr.mxu0 0.0
    %1050 = vmatpush1.msra.mxu0 %v969
    %1051 = vmatprep.subr.mxu0 0.0
    %1052 = vmatpush1.msra.mxu0 %v970
    %1053 = vmatprep.subr.mxu0 0.0
    %1054 = vmatpush1.msra.mxu0 %v971
    %1055 = vmatprep.subr.mxu0 0.0
    %1056 = vmatpush1.msra.mxu0 %v972
    %1057 = vmatprep.subr.mxu0 0.0
    %1058 = vmatpush1.msra.mxu0 %v973
    %1059 = vmatprep.subr.mxu0 0.0
    %1060 = vmatpush1.msra.mxu0 %v974
    %1061 = vmatprep.subr.mxu0 0.0
    %1062 = vmatpush1.msra.mxu0 %v975
    %1063 = vmatprep.subr.mxu0 0.0
    %1064 = vmatpush1.msra.mxu0 %v976
    %1065 = vmatprep.subr.mxu0 0.0
    %1066 = vmatpush1.msra.mxu0 %v977
    %1067 = vmatprep.subr.mxu0 0.0
    %1068 = vmatpush1.msra.mxu0 %v978
    %1069 = vmatprep.subr.mxu0 0.0
    %1070 = vmatpush1.msra.mxu0 %v979
    %1071 = vmatprep.subr.mxu0 0.0
    %1072 = vmatpush1.msra.mxu0 %v980
    %1073 = vmatprep.subr.mxu0 0.0
    %1074 = vmatpush1.msra.mxu0 %v981
    %1075 = vmatprep.subr.mxu0 0.0
    %1076 = vmatpush1.msra.mxu0 %v982
    %1077 = vmatprep.subr.mxu0 0.0
    %1078 = vmatpush1.msra.mxu0 %v983
    %1079 = vmatprep.subr.mxu0 0.0
    %1080 = vmatpush1.msra.mxu0 %v984
    %1081 = vmatprep.subr.mxu0 0.0
    %1082 = vmatpush1.msra.mxu0 %v985
    %1083 = vmatprep.mubr.f32.mxu0 %v951
    %1084 = vmatmul.mubr.f32.gmra.mrb[0].mxu0 %v950
    %v1085 = vpop.f32.mrb[0].mxu0
    %v1086 = vadd.f32 %v1018, %v1085
    %v1087 = vpop.f32.mrb[0].mxu0
    %1088 = vdwg.mxu0
    %1089 = vmatprep.subr.mxu0 0.0
    %1090 = vmatpush1.msra.mxu0 %v986
    %1091 = vmatprep.subr.mxu0 0.0
    %1092 = vmatpush1.msra.mxu0 %v987
    %1093 = vmatprep.subr.mxu0 0.0
    %1094 = vmatpush1.msra.mxu0 %v988
    %1095 = vmatprep.subr.mxu0 0.0
    %1096 = vmatpush1.msra.mxu0 %v989
    %1097 = vmatprep.subr.mxu0 0.0
    %1098 = vmatpush1.msra.mxu0 %v990
    %1099 = vmatprep.subr.mxu0 0.0
    %1100 = vmatpush1.msra.mxu0 %v991
    %1101 = vmatprep.subr.mxu0 0.0
    %1102 = vmatpush1.msra.mxu0 %v992
    %1103 = vmatprep.subr.mxu0 0.0
    %1104 = vmatpush1.msra.mxu0 %v993
    %1105 = vmatprep.subr.mxu0 0.0
    %1106 = vmatpush1.msra.mxu0 %v994
    %1107 = vmatprep.subr.mxu0 0.0
    %1108 = vmatpush1.msra.mxu0 %v995
    %1109 = vmatprep.subr.mxu0 0.0
    %1110 = vmatpush1.msra.mxu0 %v996
    %1111 = vmatprep.subr.mxu0 0.0
    %1112 = vmatpush1.msra.mxu0 %v997
    %1113 = vmatprep.subr.mxu0 0.0
    %1114 = vmatpush1.msra.mxu0 %v998
    %1115 = vmatprep.subr.mxu0 0.0
    %1116 = vmatpush1.msra.mxu0 %v999
    %1117 = vmatprep.subr.mxu0 0.0
    %1118 = vmatpush1.msra.mxu0 %v1000
    %1119 = vmatprep.subr.mxu0 0.0
    %1120 = vmatpush1.msra.mxu0 %v1001
    %1121 = vmatprep.subr.mxu0 0.0
    %1122 = vmatpush1.msra.mxu0 %v1002
    %1123 = vmatprep.subr.mxu0 0.0
    %1124 = vmatpush1.msra.mxu0 %v1003
    %1125 = vmatprep.subr.mxu0 0.0
    %1126 = vmatpush1.msra.mxu0 %v1004
    %1127 = vmatprep.subr.mxu0 0.0
    %1128 = vmatpush1.msra.mxu0 %v1005
    %1129 = vmatprep.subr.mxu0 0.0
    %1130 = vmatpush1.msra.mxu0 %v1006
    %1131 = vmatprep.subr.mxu0 0.0
    %1132 = vmatpush1.msra.mxu0 %v1007
    %1133 = vmatprep.subr.mxu0 0.0
    %1134 = vmatpush1.msra.mxu0 %v1008
    %1135 = vmatprep.subr.mxu0 0.0
    %1136 = vmatpush1.msra.mxu0 %v1009
    %1137 = vmatprep.subr.mxu0 0.0
    %1138 = vmatpush1.msra.mxu0 %v1010
    %1139 = vmatprep.subr.mxu0 0.0
    %1140 = vmatpush1.msra.mxu0 %v1011
    %1141 = vmatprep.subr.mxu0 0.0
    %1142 = vmatpush1.msra.mxu0 %v1012
    %1143 = vmatprep.subr.mxu0 0.0
    %1144 = vmatpush1.msra.mxu0 %v1013
    %1145 = vmatprep.subr.mxu0 0.0
    %1146 = vmatpush1.msra.mxu0 %v1014
    %1147 = vmatprep.subr.mxu0 0.0
    %1148 = vmatpush1.msra.mxu0 %v1015
    %1149 = vmatprep.subr.mxu0 0.0
    %1150 = vmatpush1.msra.mxu0 %v1016
    %1151 = vmatprep.subr.mxu0 0.0
    %1152 = vmatpush1.msra.mxu0 %v1017
    %1153 = vmatprep.mubr.f32.mxu0 %v953
    %1154 = vmatmul.mubr.f32.gmra.mrb[0].mxu0 %v952
    %v1155 = vpop.f32.mrb[0].mxu0
    %v1156 = vadd.f32 %v1086, %v1155
    %v1157 = vpop.f32.mrb[0].mxu0
    %1158 = vdwg.mxu0
    %1159 = vst [vmem:[#allocation10] sm:$0x1] %v1156
    // Predicated region
    $region46: #{tpu_custom_call.1} parent=1 // pred_check
      _
    $region47: #{tpu_custom_call.1} parent=1 // pred_check_branch
      %1161 = sbr.rel (0) target = $region49
    $region48: #{tpu_custom_call.1} parent=1 // pred_region
      %s1163 = ssub.s32 16, 16
      %1164 = vsyncadd [#allocation4], %s1163
      %s1166 = sshll.u32 [#allocation10], 4
      %s1167 = int_to_ptr.vmem [resolvable:$true] %s1166
      %1169 = dma.vmem_to_hbm [thread:$0]  %s1167, 16, %s7, [#allocation4]
    $region49: #{tpu_custom_call.1} parent=1 // pred_fallthru
      _
    // Predicated region
    $region50: #{tpu_custom_call.1} parent=1 // pred_check
      _
    $region51: #{tpu_custom_call.1} parent=1 // pred_check_branch
      %1171 = sbr.rel (0) target = $region53
    $region52: #{tpu_custom_call.1} parent=1 // pred_region
      %1172 = dma.done [#allocation4], 16
    $region53: #{tpu_custom_call.1} parent=1 // pred_fallthru
      _
    %1173 = vsyncpa [#allocation3], 1
    %1174 = vsyncpa [#allocation6], 1
    %1175 = vsyncpa [#allocation9], 1
    %1176 = vsyncpa [#allocation4], 1

// kernel: tpu_custom_call.1
$region0: #{tpu_custom_call.1}
  #allocation0 [shape = 'u32[]', space=smem, size = 0x4, offset = 0x4, fixed_abs, tag = 'smem constant byte address 0x4 - core index']
  #allocation1 [shape = 'u32[144,128]{1,0:T(1,128)}', space=vmem, size = 0x12000, scoped, tag = 'internal scratch']
  %s0 = inlined_call_operand.hbm [shape: f32[1,256], index: 0, kind: input, shape index: {}]
  %s1 = inlined_call_operand.hbm [shape: f32[256,512], index: 1, kind: input, shape index: {}]
  %s2 = inlined_call_operand.vmem [shape: f32[1,512], index: 2, kind: input, shape index: {}]
  %s3 = inlined_call_operand.hbm [shape: f32[512,512], index: 3, kind: input, shape index: {}]
  %s4 = inlined_call_operand.vmem [shape: f32[1,512], index: 4, kind: input, shape index: {}]
  %s5 = inlined_call_operand.hbm [shape: f32[512,128], index: 5, kind: input, shape index: {}]
  %s6 = inlined_call_operand.vmem [shape: f32[1,128], index: 6, kind: input, shape index: {}]
  %s7 = inlined_call_operand.hbm [shape: f32[1,128], index: 7, kind: output, shape index: {}]
  %s8 = sld [smem:[#allocation0]]
  $region54: #{tpu_custom_call.1} parent=0
    _
  %s10 = ssub.s32 1, %s8
  %s11 = scalar_select 0, %s10, %s8
  $region1: #{tpu_custom_call.1} parent=0
    #allocation2 [shape = 'u8[1024]{0}', space=vmem, size = 0x400, scoped, tag = 'input window, operand 0, single buffered']
    #allocation3 [shape = 's32[1]{0}', space=sflag, size = 0x4, scoped, tag = 'scoped memory for tpu_custom_call.1']
    #allocation4 [shape = 's32[1]{0}', space=sflag, size = 0x4, scoped, tag = 'scoped memory for tpu_custom_call.1']
    #allocation5 [shape = 'u8[524288]{0}', space=vmem, size = 0x80000, scoped, tag = 'input window, operand 1, single buffered']
    #allocation6 [shape = 's32[1]{0}', space=sflag, size = 0x4, scoped, tag = 'scoped memory for tpu_custom_call.1']
    #allocation7 [shape = 'u8[1048576]{0}', space=vmem, size = 0x100000, scoped, tag = 'input window, operand 3, single buffered']
    #allocation8 [shape = 'u8[262144]{0}', space=vmem, size = 0x40000, scoped, tag = 'input window, operand 5, single buffered']
    #allocation9 [shape = 's32[1]{0}', space=sflag, size = 0x4, scoped, tag = 'scoped memory for tpu_custom_call.1']
    #allocation10 [shape = 'u8[512]{0}', space=vmem, size = 0x400, scoped, tag = 'output window, operand 0, single buffered']
    %12 = vsyncpa [#allocation3], 0
    %13 = vsyncpa [#allocation6], 0
    %14 = vsyncpa [#allocation9], 0
    %15 = vsyncpa [#allocation4], 0
    // Predicated region
    $region2: #{tpu_custom_call.1} parent=1 // pred_check
      _
    $region3: #{tpu_custom_call.1} parent=1 // pred_check_branch
      %17 = sbr.rel (0) target = $region5
    $region4: #{tpu_custom_call.1} parent=1 // pred_region
      %s19 = ssub.s32 32, 32
      %20 = vsyncadd [#allocation3], %s19
      %s22 = sshll.u32 [#allocation2], 4
      %s23 = int_to_ptr.vmem [resolvable:$true] %s22
      %25 = dma.hbm_to_vmem [thread:$0]  %s0, 32, %s23, [#allocation3]
    $region5: #{tpu_custom_call.1} parent=1 // pred_fallthru
      _
    // Predicated region
    $region6: #{tpu_custom_call.1} parent=1 // pred_check
      _
    $region7: #{tpu_custom_call.1} parent=1 // pred_check_branch
      %27 = sbr.rel (0) target = $region9
    $region8: #{tpu_custom_call.1} parent=1 // pred_region
      %s29 = ssub.s32 16384, 16384
      %30 = vsyncadd [#allocation6], %s29
      %s31 = sshll.u32 [#allocation5], 4
      %s32 = int_to_ptr.vmem [resolvable:$true] %s31
      %37 = dma.hbm_to_vmem [thread:$0]  %s1, 16384, %s32, [#allocation6], 512, 512, 32
    $region9: #{tpu_custom_call.1} parent=1 // pred_fallthru
      _
    // Predicated region
    $region10: #{tpu_custom_call.1} parent=1 // pred_check
      _
    $region11: #{tpu_custom_call.1} parent=1 // pred_check_branch
      %39 = sbr.rel (0) target = $region13
    $region12: #{tpu_custom_call.1} parent=1 // pred_region
      _
    $region13: #{tpu_custom_call.1} parent=1 // pred_fallthru
      _
    // Predicated region
    $region14: #{tpu_custom_call.1} parent=1 // pred_check
      _
    $region15: #{tpu_custom_call.1} parent=1 // pred_check_branch
      %41 = sbr.rel (0) target = $region17
    $region16: #{tpu_custom_call.1} parent=1 // pred_region
      %s43 = ssub.s32 32768, 32768
      %44 = vsyncadd [#allocation6], %s43
      %s45 = sshll.u32 [#allocation7], 4
      %s46 = int_to_ptr.vmem [resolvable:$true] %s45
      %51 = dma.hbm_to_vmem [thread:$0]  %s3, 32768, %s46, [#allocation6], 512, 512, 32
    $region17: #{tpu_custom_call.1} parent=1 // pred_fallthru
      _
    // Predicated region
    $region18: #{tpu_custom_call.1} parent=1 // pred_check
      _
    $region19: #{tpu_custom_call.1} parent=1 // pred_check_branch
      %53 = sbr.rel (0) target = $region21
    $region20: #{tpu_custom_call.1} parent=1 // pred_region
      _
    $region21: #{tpu_custom_call.1} parent=1 // pred_fallthru
      _
    // Predicated region
    $region22: #{tpu_custom_call.1} parent=1 // pred_check
      _
    $region23: #{tpu_custom_call.1} parent=1 // pred_check_branch
      %55 = sbr.rel (0) target = $region25
    $region24: #{tpu_custom_call.1} parent=1 // pred_region
      %s57 = ssub.s32 8192, 8192
      %58 = vsyncadd [#allocation9], %s57
      %s59 = sshll.u32 [#allocation8], 4
      %s60 = int_to_ptr.vmem [resolvable:$true] %s59
      %65 = dma.hbm_to_vmem [thread:$0]  %s5, 8192, %s60, [#allocation9], 128, 128, 8
    $region25: #{tpu_custom_call.1} parent=1 // pred_fallthru
      _
    // Predicated region
    $region26: #{tpu_custom_call.1} parent=1 // pred_check
      _
    $region27: #{tpu_custom_call.1} parent=1 // pred_check_branch
      %67 = sbr.rel (0) target = $region29
    $region28: #{tpu_custom_call.1} parent=1 // pred_region
      _
    $region29: #{tpu_custom_call.1} parent=1 // pred_fallthru
      _
    // Predicated region
    $region30: #{tpu_custom_call.1} parent=1 // pred_check
      _
    $region31: #{tpu_custom_call.1} parent=1 // pred_check_branch
      %69 = sbr.rel (0) target = $region33
    $region32: #{tpu_custom_call.1} parent=1 // pred_region
      %70 = dma.done [#allocation3], 32
    $region33: #{tpu_custom_call.1} parent=1 // pred_fallthru
      _
    // Predicated region
    $region34: #{tpu_custom_call.1} parent=1 // pred_check
      _
    $region35: #{tpu_custom_call.1} parent=1 // pred_check_branch
      %72 = sbr.rel (0) target = $region37
    $region36: #{tpu_custom_call.1} parent=1 // pred_region
      %73 = dma.done [#allocation6], 16384
    $region37: #{tpu_custom_call.1} parent=1 // pred_fallthru
      _
    // Predicated region
    $region38: #{tpu_custom_call.1} parent=1 // pred_check
      _
    $region39: #{tpu_custom_call.1} parent=1 // pred_check_branch
      %75 = sbr.rel (0) target = $region41
    $region40: #{tpu_custom_call.1} parent=1 // pred_region
      %76 = dma.done [#allocation6], 32768
    $region41: #{tpu_custom_call.1} parent=1 // pred_fallthru
      _
    // Predicated region
    $region42: #{tpu_custom_call.1} parent=1 // pred_check
      _
    $region43: #{tpu_custom_call.1} parent=1 // pred_check_branch
      %78 = sbr.rel (0) target = $region45
    $region44: #{tpu_custom_call.1} parent=1 // pred_region
      %79 = dma.done [#allocation9], 8192
    $region45: #{tpu_custom_call.1} parent=1 // pred_fallthru
      _
    %v80 = vld [vmem:[#allocation2] sm:$0x3]
    %v81 = vld [vmem:[#allocation5] sm:$0xff]
    %v82 = vld [vmem:[#allocation5 + $0x8] sm:$0xff]
    %v83 = vld [vmem:[#allocation5 + $0x10] sm:$0xff]
    %v84 = vld [vmem:[#allocation5 + $0x18] sm:$0xff]
    %v85 = vld [vmem:[#allocation5 + $0x20] sm:$0xff]
    %v86 = vld [vmem:[#allocation5 + $0x28] sm:$0xff]
    %v87 = vld [vmem:[#allocation5 + $0x30] sm:$0xff]
    %v88 = vld [vmem:[#allocation5 + $0x38] sm:$0xff]
    %v89 = vld [vmem:[#allocation5 + $0x40] sm:$0xff]
    %v90 = vld [vmem:[#allocation5 + $0x48] sm:$0xff]
    %v91 = vld [vmem:[#allocation5 + $0x50] sm:$0xff]
    %v92 = vld [vmem:[#allocation5 + $0x58] sm:$0xff]
    %v93 = vld [vmem:[#allocation5 + $0x60] sm:$0xff]
    %v94 = vld [vmem:[#allocation5 + $0x68] sm:$0xff]
    %v95 = vld [vmem:[#allocation5 + $0x70] sm:$0xff]
    %v96 = vld [vmem:[#allocation5 + $0x78] sm:$0xff]
    %v97 = vld [vmem:[#allocation5 + $0x80] sm:$0xff]
    %v98 = vld [vmem:[#allocation5 + $0x88] sm:$0xff]
    %v99 = vld [vmem:[#allocation5 + $0x90] sm:$0xff]
    %v100 = vld [vmem:[#allocation5 + $0x98] sm:$0xff]
    %v101 = vld [vmem:[#allocation5 + $0xa0] sm:$0xff]
    %v102 = vld [vmem:[#allocation5 + $0xa8] sm:$0xff]
    %v103 = vld [vmem:[#allocation5 + $0xb0] sm:$0xff]
    %v104 = vld [vmem:[#allocation5 + $0xb8] sm:$0xff]
    %v105 = vld [vmem:[#allocation5 + $0xc0] sm:$0xff]
    %v106 = vld [vmem:[#allocation5 + $0xc8] sm:$0xff]
    %v107 = vld [vmem:[#allocation5 + $0xd0] sm:$0xff]
    %v108 = vld [vmem:[#allocation5 + $0xd8] sm:$0xff]
    %v109 = vld [vmem:[#allocation5 + $0xe0] sm:$0xff]
    %v110 = vld [vmem:[#allocation5 + $0xe8] sm:$0xff]
    %v111 = vld [vmem:[#allocation5 + $0xf0] sm:$0xff]
    %v112 = vld [vmem:[#allocation5 + $0xf8] sm:$0xff]
    %v113 = vld [vmem:[#allocation5 + $0x100] sm:$0xff]
    %v114 = vld [vmem:[#allocation5 + $0x108] sm:$0xff]
    %v115 = vld [vmem:[#allocation5 + $0x110] sm:$0xff]
    %v116 = vld [vmem:[#allocation5 + $0x118] sm:$0xff]
    %v117 = vld [vmem:[#allocation5 + $0x120] sm:$0xff]
    %v118 = vld [vmem:[#allocation5 + $0x128] sm:$0xff]
    %v119 = vld [vmem:[#allocation5 + $0x130] sm:$0xff]
    %v120 = vld [vmem:[#allocation5 + $0x138] sm:$0xff]
    %v121 = vld [vmem:[#allocation5 + $0x140] sm:$0xff]
    %v122 = vld [vmem:[#allocation5 + $0x148] sm:$0xff]
    %v123 = vld [vmem:[#allocation5 + $0x150] sm:$0xff]
    %v124 = vld [vmem:[#allocation5 + $0x158] sm:$0xff]
    %v125 = vld [vmem:[#allocation5 + $0x160] sm:$0xff]
    %v126 = vld [vmem:[#allocation5 + $0x168] sm:$0xff]
    %v127 = vld [vmem:[#allocation5 + $0x170] sm:$0xff]
    %v128 = vld [vmem:[#allocation5 + $0x178] sm:$0xff]
    %v129 = vld [vmem:[#allocation5 + $0x180] sm:$0xff]
    %v130 = vld [vmem:[#allocation5 + $0x188] sm:$0xff]
    %v131 = vld [vmem:[#allocation5 + $0x190] sm:$0xff]
    %v132 = vld [vmem:[#allocation5 + $0x198] sm:$0xff]
    %v133 = vld [vmem:[#allocation5 + $0x1a0] sm:$0xff]
    %v134 = vld [vmem:[#allocation5 + $0x1a8] sm:$0xff]
    %v135 = vld [vmem:[#allocation5 + $0x1b0] sm:$0xff]
    %v136 = vld [vmem:[#allocation5 + $0x1b8] sm:$0xff]
    %v137 = vld [vmem:[#allocation5 + $0x1c0] sm:$0xff]
    %v138 = vld [vmem:[#allocation5 + $0x1c8] sm:$0xff]
    %v139 = vld [vmem:[#allocation5 + $0x1d0] sm:$0xff]
    %v140 = vld [vmem:[#allocation5 + $0x1d8] sm:$0xff]
    %v141 = vld [vmem:[#allocation5 + $0x1e0] sm:$0xff]
    %v142 = vld [vmem:[#allocation5 + $0x1e8] sm:$0xff]
    %v143 = vld [vmem:[#allocation5 + $0x1f0] sm:$0xff]
    %v144 = vld [vmem:[#allocation5 + $0x1f8] sm:$0xff]
    %v145 = vld [vmem:[#allocation5 + $0x200] sm:$0xff]
    %v146 = vld [vmem:[#allocation5 + $0x208] sm:$0xff]
    %v147 = vld [vmem:[#allocation5 + $0x210] sm:$0xff]
    %v148 = vld [vmem:[#allocation5 + $0x218] sm:$0xff]
    %v149 = vld [vmem:[#allocation5 + $0x220] sm:$0xff]
    %v150 = vld [vmem:[#allocation5 + $0x228] sm:$0xff]
    %v151 = vld [vmem:[#allocation5 + $0x230] sm:$0xff]
    %v152 = vld [vmem:[#allocation5 + $0x238] sm:$0xff]
    %v153 = vld [vmem:[#allocation5 + $0x240] sm:$0xff]
    %v154 = vld [vmem:[#allocation5 + $0x248] sm:$0xff]
    %v155 = vld [vmem:[#allocation5 + $0x250] sm:$0xff]
    %v156 = vld [vmem:[#allocation5 + $0x258] sm:$0xff]
    %v157 = vld [vmem:[#allocation5 + $0x260] sm:$0xff]
    %v158 = vld [vmem:[#allocation5 + $0x268] sm:$0xff]
    %v159 = vld [vmem:[#allocation5 + $0x270] sm:$0xff]
    %v160 = vld [vmem:[#allocation5 + $0x278] sm:$0xff]
    %v161 = vld [vmem:[#allocation5 + $0x280] sm:$0xff]
    %v162 = vld [vmem:[#allocation5 + $0x288] sm:$0xff]
    %v163 = vld [vmem:[#allocation5 + $0x290] sm:$0xff]
    %v164 = vld [vmem:[#allocation5 + $0x298] sm:$0xff]
    %v165 = vld [vmem:[#allocation5 + $0x2a0] sm:$0xff]
    %v166 = vld [vmem:[#allocation5 + $0x2a8] sm:$0xff]
    %v167 = vld [vmem:[#allocation5 + $0x2b0] sm:$0xff]
    %v168 = vld [vmem:[#allocation5 + $0x2b8] sm:$0xff]
    %v169 = vld [vmem:[#allocation5 + $0x2c0] sm:$0xff]
    %v170 = vld [vmem:[#allocation5 + $0x2c8] sm:$0xff]
    %v171 = vld [vmem:[#allocation5 + $0x2d0] sm:$0xff]
    %v172 = vld [vmem:[#allocation5 + $0x2d8] sm:$0xff]
    %v173 = vld [vmem:[#allocation5 + $0x2e0] sm:$0xff]
    %v174 = vld [vmem:[#allocation5 + $0x2e8] sm:$0xff]
    %v175 = vld [vmem:[#allocation5 + $0x2f0] sm:$0xff]
    %v176 = vld [vmem:[#allocation5 + $0x2f8] sm:$0xff]
    %v177 = vld [vmem:[#allocation5 + $0x300] sm:$0xff]
    %v178 = vld [vmem:[#allocation5 + $0x308] sm:$0xff]
    %v179 = vld [vmem:[#allocation5 + $0x310] sm:$0xff]
    %v180 = vld [vmem:[#allocation5 + $0x318] sm:$0xff]
    %v181 = vld [vmem:[#allocation5 + $0x320] sm:$0xff]
    %v182 = vld [vmem:[#allocation5 + $0x328] sm:$0xff]
    %v183 = vld [vmem:[#allocation5 + $0x330] sm:$0xff]
    %v184 = vld [vmem:[#allocation5 + $0x338] sm:$0xff]
    %v185 = vld [vmem:[#allocation5 + $0x340] sm:$0xff]
    %v186 = vld [vmem:[#allocation5 + $0x348] sm:$0xff]
    %v187 = vld [vmem:[#allocation5 + $0x350] sm:$0xff]
    %v188 = vld [vmem:[#allocation5 + $0x358] sm:$0xff]
    %v189 = vld [vmem:[#allocation5 + $0x360] sm:$0xff]
    %v190 = vld [vmem:[#allocation5 + $0x368] sm:$0xff]
    %v191 = vld [vmem:[#allocation5 + $0x370] sm:$0xff]
    %v192 = vld [vmem:[#allocation5 + $0x378] sm:$0xff]
    %v193 = vld [vmem:[#allocation5 + $0x380] sm:$0xff]
    %v194 = vld [vmem:[#allocation5 + $0x388] sm:$0xff]
    %v195 = vld [vmem:[#allocation5 + $0x390] sm:$0xff]
    %v196 = vld [vmem:[#allocation5 + $0x398] sm:$0xff]
    %v197 = vld [vmem:[#allocation5 + $0x3a0] sm:$0xff]
    %v198 = vld [vmem:[#allocation5 + $0x3a8] sm:$0xff]
    %v199 = vld [vmem:[#allocation5 + $0x3b0] sm:$0xff]
    %v200 = vld [vmem:[#allocation5 + $0x3b8] sm:$0xff]
    %v201 = vld [vmem:[#allocation5 + $0x3c0] sm:$0xff]
    %v202 = vld [vmem:[#allocation5 + $0x3c8] sm:$0xff]
    %v203 = vld [vmem:[#allocation5 + $0x3d0] sm:$0xff]
    %v204 = vld [vmem:[#allocation5 + $0x3d8] sm:$0xff]
    %v205 = vld [vmem:[#allocation5 + $0x3e0] sm:$0xff]
    %v206 = vld [vmem:[#allocation5 + $0x3e8] sm:$0xff]
    %v207 = vld [vmem:[#allocation5 + $0x3f0] sm:$0xff]
    %v208 = vld [vmem:[#allocation5 + $0x3f8] sm:$0xff]
    %v209 = vld [vmem:[%s2] sm:$0xf]
    %v211 = vlaneseq
    %v212 = vshrl.u32 %v211, 7
    %v213 = vsub.s32 0, %v212
    %v214 = vrot.slane %v80, %v213
    %v215 = vlaneseq
    %v216 = vshrl.u32 %v215, 7
    %v217 = vsub.s32 1, %v216
    %v218 = vrot.slane %v80, %v217
    %v222 = vlaneseq
    %v223 = vshrl.u32 %v222, 7
    %v224 = vsub.s32 0, %v223
    %v225 = vrot.slane %v209, %v224
    %v226 = vlaneseq
    %v227 = vshrl.u32 %v226, 7
    %v228 = vsub.s32 1, %v227
    %v229 = vrot.slane %v209, %v228
    %v230 = vlaneseq
    %v231 = vshrl.u32 %v230, 7
    %v232 = vsub.s32 2, %v231
    %v233 = vrot.slane %v209, %v232
    %v234 = vlaneseq
    %v235 = vshrl.u32 %v234, 7
    %v236 = vsub.s32 3, %v235
    %v237 = vrot.slane %v209, %v236
    %242 = vmatprep.subr.mxu0 %v82
    %243 = vmatpush1.msra.mxu0 %v81
    %244 = vmatprep.subr.mxu0 %v86
    %245 = vmatpush1.msra.mxu0 %v85
    %246 = vmatprep.subr.mxu0 %v90
    %247 = vmatpush1.msra.mxu0 %v89
    %248 = vmatprep.subr.mxu0 %v94
    %249 = vmatpush1.msra.mxu0 %v93
    %250 = vmatprep.subr.mxu0 %v98
    %251 = vmatpush1.msra.mxu0 %v97
    %252 = vmatprep.subr.mxu0 %v102
    %253 = vmatpush1.msra.mxu0 %v101
    %254 = vmatprep.subr.mxu0 %v106
    %255 = vmatpush1.msra.mxu0 %v105
    %256 = vmatprep.subr.mxu0 %v110
    %257 = vmatpush1.msra.mxu0 %v109
    %258 = vmatprep.subr.mxu0 %v114
    %259 = vmatpush1.msra.mxu0 %v113
    %260 = vmatprep.subr.mxu0 %v118
    %261 = vmatpush1.msra.mxu0 %v117
    %262 = vmatprep.subr.mxu0 %v122
    %263 = vmatpush1.msra.mxu0 %v121
    %264 = vmatprep.subr.mxu0 %v126
    %265 = vmatpush1.msra.mxu0 %v125
    %266 = vmatprep.subr.mxu0 %v130
    %267 = vmatpush1.msra.mxu0 %v129
    %268 = vmatprep.subr.mxu0 %v134
    %269 = vmatpush1.msra.mxu0 %v133
    %270 = vmatprep.subr.mxu0 %v138
    %271 = vmatpush1.msra.mxu0 %v137
    %272 = vmatprep.subr.mxu0 %v142
    %273 = vmatpush1.msra.mxu0 %v141
    %274 = vmatprep.subr.mxu0 %v146
    %275 = vmatpush1.msra.mxu0 %v145
    %276 = vmatprep.subr.mxu0 %v150
    %277 = vmatpush1.msra.mxu0 %v149
    %278 = vmatprep.subr.mxu0 %v154
    %279 = vmatpush1.msra.mxu0 %v153
    %280 = vmatprep.subr.mxu0 %v158
    %281 = vmatpush1.msra.mxu0 %v157
    %282 = vmatprep.subr.mxu0 %v162
    %283 = vmatpush1.msra.mxu0 %v161
    %284 = vmatprep.subr.mxu0 %v166
    %285 = vmatpush1.msra.mxu0 %v165
    %286 = vmatprep.subr.mxu0 %v170
    %287 = vmatpush1.msra.mxu0 %v169
    %288 = vmatprep.subr.mxu0 %v174
    %289 = vmatpush1.msra.mxu0 %v173
    %290 = vmatprep.subr.mxu0 %v178
    %291 = vmatpush1.msra.mxu0 %v177
    %292 = vmatprep.subr.mxu0 %v182
    %293 = vmatpush1.msra.mxu0 %v181
    %294 = vmatprep.subr.mxu0 %v186
    %295 = vmatpush1.msra.mxu0 %v185
    %296 = vmatprep.subr.mxu0 %v190
    %297 = vmatpush1.msra.mxu0 %v189
    %298 = vmatprep.subr.mxu0 %v194
    %299 = vmatpush1.msra.mxu0 %v193
    %300 = vmatprep.subr.mxu0 %v198
    %301 = vmatpush1.msra.mxu0 %v197
    %302 = vmatprep.subr.mxu0 %v202
    %303 = vmatpush1.msra.mxu0 %v201
    %304 = vmatprep.subr.mxu0 %v206
    %305 = vmatpush1.msra.mxu0 %v205
    %306 = vmatprep.mubr.f32.mxu0 %v218
    %307 = vmatmul.mubr.f32.gmra.mrb[0].mxu0 %v214
    %v308 = vpop.f32.mrb[0].mxu0
    %v309 = vadd.f32 %v225, %v308
    %v310 = vpop.f32.mrb[0].mxu0
    %v311 = vadd.f32 %v229, %v310
    %312 = vdwg.mxu0
    %313 = vmatprep.subr.mxu0 %v84
    %314 = vmatpush1.msra.mxu0 %v83
    %315 = vmatprep.subr.mxu0 %v88
    %316 = vmatpush1.msra.mxu0 %v87
    %317 = vmatprep.subr.mxu0 %v92
    %318 = vmatpush1.msra.mxu0 %v91
    %319 = vmatprep.subr.mxu0 %v96
    %320 = vmatpush1.msra.mxu0 %v95
    %321 = vmatprep.subr.mxu0 %v100
    %322 = vmatpush1.msra.mxu0 %v99
    %323 = vmatprep.subr.mxu0 %v104
    %324 = vmatpush1.msra.mxu0 %v103
    %325 = vmatprep.subr.mxu0 %v108
    %326 = vmatpush1.msra.mxu0 %v107
    %327 = vmatprep.subr.mxu0 %v112
    %328 = vmatpush1.msra.mxu0 %v111
    %329 = vmatprep.subr.mxu0 %v116
    %330 = vmatpush1.msra.mxu0 %v115
    %331 = vmatprep.subr.mxu0 %v120
    %332 = vmatpush1.msra.mxu0 %v119
    %333 = vmatprep.subr.mxu0 %v124
    %334 = vmatpush1.msra.mxu0 %v123
    %335 = vmatprep.subr.mxu0 %v128
    %336 = vmatpush1.msra.mxu0 %v127
    %337 = vmatprep.subr.mxu0 %v132
    %338 = vmatpush1.msra.mxu0 %v131
    %339 = vmatprep.subr.mxu0 %v136
    %340 = vmatpush1.msra.mxu0 %v135
    %341 = vmatprep.subr.mxu0 %v140
    %342 = vmatpush1.msra.mxu0 %v139
    %343 = vmatprep.subr.mxu0 %v144
    %344 = vmatpush1.msra.mxu0 %v143
    %345 = vmatprep.subr.mxu0 %v148
    %346 = vmatpush1.msra.mxu0 %v147
    %347 = vmatprep.subr.mxu0 %v152
    %348 = vmatpush1.msra.mxu0 %v151
    %349 = vmatprep.subr.mxu0 %v156
    %350 = vmatpush1.msra.mxu0 %v155
    %351 = vmatprep.subr.mxu0 %v160
    %352 = vmatpush1.msra.mxu0 %v159
    %353 = vmatprep.subr.mxu0 %v164
    %354 = vmatpush1.msra.mxu0 %v163
    %355 = vmatprep.subr.mxu0 %v168
    %356 = vmatpush1.msra.mxu0 %v167
    %357 = vmatprep.subr.mxu0 %v172
    %358 = vmatpush1.msra.mxu0 %v171
    %359 = vmatprep.subr.mxu0 %v176
    %360 = vmatpush1.msra.mxu0 %v175
    %361 = vmatprep.subr.mxu0 %v180
    %362 = vmatpush1.msra.mxu0 %v179
    %363 = vmatprep.subr.mxu0 %v184
    %364 = vmatpush1.msra.mxu0 %v183
    %365 = vmatprep.subr.mxu0 %v188
    %366 = vmatpush1.msra.mxu0 %v187
    %367 = vmatprep.subr.mxu0 %v192
    %368 = vmatpush1.msra.mxu0 %v191
    %369 = vmatprep.subr.mxu0 %v196
    %370 = vmatpush1.msra.mxu0 %v195
    %371 = vmatprep.subr.mxu0 %v200
    %372 = vmatpush1.msra.mxu0 %v199
    %373 = vmatprep.subr.mxu0 %v204
    %374 = vmatpush1.msra.mxu0 %v203
    %375 = vmatprep.subr.mxu0 %v208
    %376 = vmatpush1.msra.mxu0 %v207
    %377 = vmatprep.mubr.f32.mxu0 %v218
    %378 = vmatmul.mubr.f32.gmra.mrb[0].mxu0 %v214
    %v379 = vpop.f32.mrb[0].mxu0
    %v380 = vadd.f32 %v233, %v379
    %v381 = vpop.f32.mrb[0].mxu0
    %v382 = vadd.f32 %v237, %v381
    %383 = vdwg.mxu0
    %v384 = vmax.f32 %v309, 0.0
    %v385 = vmax.f32 %v311, 0.0
    %v386 = vmax.f32 %v380, 0.0
    %v387 = vmax.f32 %v382, 0.0
    %v388 = vld [vmem:[#allocation7] sm:$0xff]
    %v389 = vld [vmem:[#allocation7 + $0x8] sm:$0xff]
    %v390 = vld [vmem:[#allocation7 + $0x10] sm:$0xff]
    %v391 = vld [vmem:[#allocation7 + $0x18] sm:$0xff]
    %v392 = vld [vmem:[#allocation7 + $0x20] sm:$0xff]
    %v393 = vld [vmem:[#allocation7 + $0x28] sm:$0xff]
    %v394 = vld [vmem:[#allocation7 + $0x30] sm:$0xff]
    %v395 = vld [vmem:[#allocation7 + $0x38] sm:$0xff]
    %v396 = vld [vmem:[#allocation7 + $0x40] sm:$0xff]
    %v397 = vld [vmem:[#allocation7 + $0x48] sm:$0xff]
    %v398 = vld [vmem:[#allocation7 + $0x50] sm:$0xff]
    %v399 = vld [vmem:[#allocation7 + $0x58] sm:$0xff]
    %v400 = vld [vmem:[#allocation7 + $0x60] sm:$0xff]
    %v401 = vld [vmem:[#allocation7 + $0x68] sm:$0xff]
    %v402 = vld [vmem:[#allocation7 + $0x70] sm:$0xff]
    %v403 = vld [vmem:[#allocation7 + $0x78] sm:$0xff]
    %v404 = vld [vmem:[#allocation7 + $0x80] sm:$0xff]
    %v405 = vld [vmem:[#allocation7 + $0x88] sm:$0xff]
    %v406 = vld [vmem:[#allocation7 + $0x90] sm:$0xff]
    %v407 = vld [vmem:[#allocation7 + $0x98] sm:$0xff]
    %v408 = vld [vmem:[#allocation7 + $0xa0] sm:$0xff]
    %v409 = vld [vmem:[#allocation7 + $0xa8] sm:$0xff]
    %v410 = vld [vmem:[#allocation7 + $0xb0] sm:$0xff]
    %v411 = vld [vmem:[#allocation7 + $0xb8] sm:$0xff]
    %v412 = vld [vmem:[#allocation7 + $0xc0] sm:$0xff]
    %v413 = vld [vmem:[#allocation7 + $0xc8] sm:$0xff]
    %v414 = vld [vmem:[#allocation7 + $0xd0] sm:$0xff]
    %v415 = vld [vmem:[#allocation7 + $0xd8] sm:$0xff]
    %v416 = vld [vmem:[#allocation7 + $0xe0] sm:$0xff]
    %v417 = vld [vmem:[#allocation7 + $0xe8] sm:$0xff]
    %v418 = vld [vmem:[#allocation7 + $0xf0] sm:$0xff]
    %v419 = vld [vmem:[#allocation7 + $0xf8] sm:$0xff]
    %v420 = vld [vmem:[#allocation7 + $0x100] sm:$0xff]
    %v421 = vld [vmem:[#allocation7 + $0x108] sm:$0xff]
    %v422 = vld [vmem:[#allocation7 + $0x110] sm:$0xff]
    %v423 = vld [vmem:[#allocation7 + $0x118] sm:$0xff]
    %v424 = vld [vmem:[#allocation7 + $0x120] sm:$0xff]
    %v425 = vld [vmem:[#allocation7 + $0x128] sm:$0xff]
    %v426 = vld [vmem:[#allocation7 + $0x130] sm:$0xff]
    %v427 = vld [vmem:[#allocation7 + $0x138] sm:$0xff]
    %v428 = vld [vmem:[#allocation7 + $0x140] sm:$0xff]
    %v429 = vld [vmem:[#allocation7 + $0x148] sm:$0xff]
    %v430 = vld [vmem:[#allocation7 + $0x150] sm:$0xff]
    %v431 = vld [vmem:[#allocation7 + $0x158] sm:$0xff]
    %v432 = vld [vmem:[#allocation7 + $0x160] sm:$0xff]
    %v433 = vld [vmem:[#allocation7 + $0x168] sm:$0xff]
    %v434 = vld [vmem:[#allocation7 + $0x170] sm:$0xff]
    %v435 = vld [vmem:[#allocation7 + $0x178] sm:$0xff]
    %v436 = vld [vmem:[#allocation7 + $0x180] sm:$0xff]
    %v437 = vld [vmem:[#allocation7 + $0x188] sm:$0xff]
    %v438 = vld [vmem:[#allocation7 + $0x190] sm:$0xff]
    %v439 = vld [vmem:[#allocation7 + $0x198] sm:$0xff]
    %v440 = vld [vmem:[#allocation7 + $0x1a0] sm:$0xff]
    %v441 = vld [vmem:[#allocation7 + $0x1a8] sm:$0xff]
    %v442 = vld [vmem:[#allocation7 + $0x1b0] sm:$0xff]
    %v443 = vld [vmem:[#allocation7 + $0x1b8] sm:$0xff]
    %v444 = vld [vmem:[#allocation7 + $0x1c0] sm:$0xff]
    %v445 = vld [vmem:[#allocation7 + $0x1c8] sm:$0xff]
    %v446 = vld [vmem:[#allocation7 + $0x1d0] sm:$0xff]
    %v447 = vld [vmem:[#allocation7 + $0x1d8] sm:$0xff]
    %v448 = vld [vmem:[#allocation7 + $0x1e0] sm:$0xff]
    %v449 = vld [vmem:[#allocation7 + $0x1e8] sm:$0xff]
    %v450 = vld [vmem:[#allocation7 + $0x1f0] sm:$0xff]
    %v451 = vld [vmem:[#allocation7 + $0x1f8] sm:$0xff]
    %v452 = vld [vmem:[#allocation7 + $0x200] sm:$0xff]
    %v453 = vld [vmem:[#allocation7 + $0x208] sm:$0xff]
    %v454 = vld [vmem:[#allocation7 + $0x210] sm:$0xff]
    %v455 = vld [vmem:[#allocation7 + $0x218] sm:$0xff]
    %v456 = vld [vmem:[#allocation7 + $0x220] sm:$0xff]
    %v457 = vld [vmem:[#allocation7 + $0x228] sm:$0xff]
    %v458 = vld [vmem:[#allocation7 + $0x230] sm:$0xff]
    %v459 = vld [vmem:[#allocation7 + $0x238] sm:$0xff]
    %v460 = vld [vmem:[#allocation7 + $0x240] sm:$0xff]
    %v461 = vld [vmem:[#allocation7 + $0x248] sm:$0xff]
    %v462 = vld [vmem:[#allocation7 + $0x250] sm:$0xff]
    %v463 = vld [vmem:[#allocation7 + $0x258] sm:$0xff]
    %v464 = vld [vmem:[#allocation7 + $0x260] sm:$0xff]
    %v465 = vld [vmem:[#allocation7 + $0x268] sm:$0xff]
    %v466 = vld [vmem:[#allocation7 + $0x270] sm:$0xff]
    %v467 = vld [vmem:[#allocation7 + $0x278] sm:$0xff]
    %v468 = vld [vmem:[#allocation7 + $0x280] sm:$0xff]
    %v469 = vld [vmem:[#allocation7 + $0x288] sm:$0xff]
    %v470 = vld [vmem:[#allocation7 + $0x290] sm:$0xff]
    %v471 = vld [vmem:[#allocation7 + $0x298] sm:$0xff]
    %v472 = vld [vmem:[#allocation7 + $0x2a0] sm:$0xff]
    %v473 = vld [vmem:[#allocation7 + $0x2a8] sm:$0xff]
    %v474 = vld [vmem:[#allocation7 + $0x2b0] sm:$0xff]
    %v475 = vld [vmem:[#allocation7 + $0x2b8] sm:$0xff]
    %v476 = vld [vmem:[#allocation7 + $0x2c0] sm:$0xff]
    %v477 = vld [vmem:[#allocation7 + $0x2c8] sm:$0xff]
    %v478 = vld [vmem:[#allocation7 + $0x2d0] sm:$0xff]
    %v479 = vld [vmem:[#allocation7 + $0x2d8] sm:$0xff]
    %v480 = vld [vmem:[#allocation7 + $0x2e0] sm:$0xff]
    %v481 = vld [vmem:[#allocation7 + $0x2e8] sm:$0xff]
    %v482 = vld [vmem:[#allocation7 + $0x2f0] sm:$0xff]
    %v483 = vld [vmem:[#allocation7 + $0x2f8] sm:$0xff]
    %v484 = vld [vmem:[#allocation7 + $0x300] sm:$0xff]
    %v485 = vld [vmem:[#allocation7 + $0x308] sm:$0xff]
    %v486 = vld [vmem:[#allocation7 + $0x310] sm:$0xff]
    %v487 = vld [vmem:[#allocation7 + $0x318] sm:$0xff]
    %v488 = vld [vmem:[#allocation7 + $0x320] sm:$0xff]
    %v489 = vld [vmem:[#allocation7 + $0x328] sm:$0xff]
    %v490 = vld [vmem:[#allocation7 + $0x330] sm:$0xff]
    %v491 = vld [vmem:[#allocation7 + $0x338] sm:$0xff]
    %v492 = vld [vmem:[#allocation7 + $0x340] sm:$0xff]
    %v493 = vld [vmem:[#allocation7 + $0x348] sm:$0xff]
    %v494 = vld [vmem:[#allocation7 + $0x350] sm:$0xff]
    %v495 = vld [vmem:[#allocation7 + $0x358] sm:$0xff]
    %v496 = vld [vmem:[#allocation7 + $0x360] sm:$0xff]
    %v497 = vld [vmem:[#allocation7 + $0x368] sm:$0xff]
    %v498 = vld [vmem:[#allocation7 + $0x370] sm:$0xff]
    %v499 = vld [vmem:[#allocation7 + $0x378] sm:$0xff]
    %v500 = vld [vmem:[#allocation7 + $0x380] sm:$0xff]
    %v501 = vld [vmem:[#allocation7 + $0x388] sm:$0xff]
    %v502 = vld [vmem:[#allocation7 + $0x390] sm:$0xff]
    %v503 = vld [vmem:[#allocation7 + $0x398] sm:$0xff]
    %v504 = vld [vmem:[#allocation7 + $0x3a0] sm:$0xff]
    %v505 = vld [vmem:[#allocation7 + $0x3a8] sm:$0xff]
    %v506 = vld [vmem:[#allocation7 + $0x3b0] sm:$0xff]
    %v507 = vld [vmem:[#allocation7 + $0x3b8] sm:$0xff]
    %v508 = vld [vmem:[#allocation7 + $0x3c0] sm:$0xff]
    %v509 = vld [vmem:[#allocation7 + $0x3c8] sm:$0xff]
    %v510 = vld [vmem:[#allocation7 + $0x3d0] sm:$0xff]
    %v511 = vld [vmem:[#allocation7 + $0x3d8] sm:$0xff]
    %v512 = vld [vmem:[#allocation7 + $0x3e0] sm:$0xff]
    %v513 = vld [vmem:[#allocation7 + $0x3e8] sm:$0xff]
    %v514 = vld [vmem:[#allocation7 + $0x3f0] sm:$0xff]
    %v515 = vld [vmem:[#allocation7 + $0x3f8] sm:$0xff]
    %v516 = vld [vmem:[#allocation7 + $0x400] sm:$0xff]
    %v517 = vld [vmem:[#allocation7 + $0x408] sm:$0xff]
    %v518 = vld [vmem:[#allocation7 + $0x410] sm:$0xff]
    %v519 = vld [vmem:[#allocation7 + $0x418] sm:$0xff]
    %v520 = vld [vmem:[#allocation7 + $0x420] sm:$0xff]
    %v521 = vld [vmem:[#allocation7 + $0x428] sm:$0xff]
    %v522 = vld [vmem:[#allocation7 + $0x430] sm:$0xff]
    %v523 = vld [vmem:[#allocation7 + $0x438] sm:$0xff]
    %v524 = vld [vmem:[#allocation7 + $0x440] sm:$0xff]
    %v525 = vld [vmem:[#allocation7 + $0x448] sm:$0xff]
    %v526 = vld [vmem:[#allocation7 + $0x450] sm:$0xff]
    %v527 = vld [vmem:[#allocation7 + $0x458] sm:$0xff]
    %v528 = vld [vmem:[#allocation7 + $0x460] sm:$0xff]
    %v529 = vld [vmem:[#allocation7 + $0x468] sm:$0xff]
    %v530 = vld [vmem:[#allocation7 + $0x470] sm:$0xff]
    %v531 = vld [vmem:[#allocation7 + $0x478] sm:$0xff]
    %v532 = vld [vmem:[#allocation7 + $0x480] sm:$0xff]
    %v533 = vld [vmem:[#allocation7 + $0x488] sm:$0xff]
    %v534 = vld [vmem:[#allocation7 + $0x490] sm:$0xff]
    %v535 = vld [vmem:[#allocation7 + $0x498] sm:$0xff]
    %v536 = vld [vmem:[#allocation7 + $0x4a0] sm:$0xff]
    %v537 = vld [vmem:[#allocation7 + $0x4a8] sm:$0xff]
    %v538 = vld [vmem:[#allocation7 + $0x4b0] sm:$0xff]
    %v539 = vld [vmem:[#allocation7 + $0x4b8] sm:$0xff]
    %v540 = vld [vmem:[#allocation7 + $0x4c0] sm:$0xff]
    %v541 = vld [vmem:[#allocation7 + $0x4c8] sm:$0xff]
    %v542 = vld [vmem:[#allocation7 + $0x4d0] sm:$0xff]
    %v543 = vld [vmem:[#allocation7 + $0x4d8] sm:$0xff]
    %v544 = vld [vmem:[#allocation7 + $0x4e0] sm:$0xff]
    %v545 = vld [vmem:[#allocation7 + $0x4e8] sm:$0xff]
    %v546 = vld [vmem:[#allocation7 + $0x4f0] sm:$0xff]
    %v547 = vld [vmem:[#allocation7 + $0x4f8] sm:$0xff]
    %v548 = vld [vmem:[#allocation7 + $0x500] sm:$0xff]
    %v549 = vld [vmem:[#allocation7 + $0x508] sm:$0xff]
    %v550 = vld [vmem:[#allocation7 + $0x510] sm:$0xff]
    %v551 = vld [vmem:[#allocation7 + $0x518] sm:$0xff]
    %v552 = vld [vmem:[#allocation7 + $0x520] sm:$0xff]
    %v553 = vld [vmem:[#allocation7 + $0x528] sm:$0xff]
    %v554 = vld [vmem:[#allocation7 + $0x530] sm:$0xff]
    %v555 = vld [vmem:[#allocation7 + $0x538] sm:$0xff]
    %v556 = vld [vmem:[#allocation7 + $0x540] sm:$0xff]
    %v557 = vld [vmem:[#allocation7 + $0x548] sm:$0xff]
    %v558 = vld [vmem:[#allocation7 + $0x550] sm:$0xff]
    %v559 = vld [vmem:[#allocation7 + $0x558] sm:$0xff]
    %v560 = vld [vmem:[#allocation7 + $0x560] sm:$0xff]
    %v561 = vld [vmem:[#allocation7 + $0x568] sm:$0xff]
    %v562 = vld [vmem:[#allocation7 + $0x570] sm:$0xff]
    %v563 = vld [vmem:[#allocation7 + $0x578] sm:$0xff]
    %v564 = vld [vmem:[#allocation7 + $0x580] sm:$0xff]
    %v565 = vld [vmem:[#allocation7 + $0x588] sm:$0xff]
    %v566 = vld [vmem:[#allocation7 + $0x590] sm:$0xff]
    %v567 = vld [vmem:[#allocation7 + $0x598] sm:$0xff]
    %v568 = vld [vmem:[#allocation7 + $0x5a0] sm:$0xff]
    %v569 = vld [vmem:[#allocation7 + $0x5a8] sm:$0xff]
    %v570 = vld [vmem:[#allocation7 + $0x5b0] sm:$0xff]
    %v571 = vld [vmem:[#allocation7 + $0x5b8] sm:$0xff]
    %v572 = vld [vmem:[#allocation7 + $0x5c0] sm:$0xff]
    %v573 = vld [vmem:[#allocation7 + $0x5c8] sm:$0xff]
    %v574 = vld [vmem:[#allocation7 + $0x5d0] sm:$0xff]
    %v575 = vld [vmem:[#allocation7 + $0x5d8] sm:$0xff]
    %v576 = vld [vmem:[#allocation7 + $0x5e0] sm:$0xff]
    %v577 = vld [vmem:[#allocation7 + $0x5e8] sm:$0xff]
    %v578 = vld [vmem:[#allocation7 + $0x5f0] sm:$0xff]
    %v579 = vld [vmem:[#allocation7 + $0x5f8] sm:$0xff]
    %v580 = vld [vmem:[#allocation7 + $0x600] sm:$0xff]
    %v581 = vld [vmem:[#allocation7 + $0x608] sm:$0xff]
    %v582 = vld [vmem:[#allocation7 + $0x610] sm:$0xff]
    %v583 = vld [vmem:[#allocation7 + $0x618] sm:$0xff]
    %v584 = vld [vmem:[#allocation7 + $0x620] sm:$0xff]
    %v585 = vld [vmem:[#allocation7 + $0x628] sm:$0xff]
    %v586 = vld [vmem:[#allocation7 + $0x630] sm:$0xff]
    %v587 = vld [vmem:[#allocation7 + $0x638] sm:$0xff]
    %v588 = vld [vmem:[#allocation7 + $0x640] sm:$0xff]
    %v589 = vld [vmem:[#allocation7 + $0x648] sm:$0xff]
    %v590 = vld [vmem:[#allocation7 + $0x650] sm:$0xff]
    %v591 = vld [vmem:[#allocation7 + $0x658] sm:$0xff]
    %v592 = vld [vmem:[#allocation7 + $0x660] sm:$0xff]
    %v593 = vld [vmem:[#allocation7 + $0x668] sm:$0xff]
    %v594 = vld [vmem:[#allocation7 + $0x670] sm:$0xff]
    %v595 = vld [vmem:[#allocation7 + $0x678] sm:$0xff]
    %v596 = vld [vmem:[#allocation7 + $0x680] sm:$0xff]
    %v597 = vld [vmem:[#allocation7 + $0x688] sm:$0xff]
    %v598 = vld [vmem:[#allocation7 + $0x690] sm:$0xff]
    %v599 = vld [vmem:[#allocation7 + $0x698] sm:$0xff]
    %v600 = vld [vmem:[#allocation7 + $0x6a0] sm:$0xff]
    %v601 = vld [vmem:[#allocation7 + $0x6a8] sm:$0xff]
    %v602 = vld [vmem:[#allocation7 + $0x6b0] sm:$0xff]
    %v603 = vld [vmem:[#allocation7 + $0x6b8] sm:$0xff]
    %v604 = vld [vmem:[#allocation7 + $0x6c0] sm:$0xff]
    %v605 = vld [vmem:[#allocation7 + $0x6c8] sm:$0xff]
    %v606 = vld [vmem:[#allocation7 + $0x6d0] sm:$0xff]
    %v607 = vld [vmem:[#allocation7 + $0x6d8] sm:$0xff]
    %v608 = vld [vmem:[#allocation7 + $0x6e0] sm:$0xff]
    %v609 = vld [vmem:[#allocation7 + $0x6e8] sm:$0xff]
    %v610 = vld [vmem:[#allocation7 + $0x6f0] sm:$0xff]
    %v611 = vld [vmem:[#allocation7 + $0x6f8] sm:$0xff]
    %v612 = vld [vmem:[#allocation7 + $0x700] sm:$0xff]
    %v613 = vld [vmem:[#allocation7 + $0x708] sm:$0xff]
    %v614 = vld [vmem:[#allocation7 + $0x710] sm:$0xff]
    %v615 = vld [vmem:[#allocation7 + $0x718] sm:$0xff]
    %v616 = vld [vmem:[#allocation7 + $0x720] sm:$0xff]
    %v617 = vld [vmem:[#allocation7 + $0x728] sm:$0xff]
    %v618 = vld [vmem:[#allocation7 + $0x730] sm:$0xff]
    %v619 = vld [vmem:[#allocation7 + $0x738] sm:$0xff]
    %v620 = vld [vmem:[#allocation7 + $0x740] sm:$0xff]
    %v621 = vld [vmem:[#allocation7 + $0x748] sm:$0xff]
    %v622 = vld [vmem:[#allocation7 + $0x750] sm:$0xff]
    %v623 = vld [vmem:[#allocation7 + $0x758] sm:$0xff]
    %v624 = vld [vmem:[#allocation7 + $0x760] sm:$0xff]
    %v625 = vld [vmem:[#allocation7 + $0x768] sm:$0xff]
    %v626 = vld [vmem:[#allocation7 + $0x770] sm:$0xff]
    %v627 = vld [vmem:[#allocation7 + $0x778] sm:$0xff]
    %v628 = vld [vmem:[#allocation7 + $0x780] sm:$0xff]
    %v629 = vld [vmem:[#allocation7 + $0x788] sm:$0xff]
    %v630 = vld [vmem:[#allocation7 + $0x790] sm:$0xff]
    %v631 = vld [vmem:[#allocation7 + $0x798] sm:$0xff]
    %v632 = vld [vmem:[#allocation7 + $0x7a0] sm:$0xff]
    %v633 = vld [vmem:[#allocation7 + $0x7a8] sm:$0xff]
    %v634 = vld [vmem:[#allocation7 + $0x7b0] sm:$0xff]
    %v635 = vld [vmem:[#allocation7 + $0x7b8] sm:$0xff]
    %v636 = vld [vmem:[#allocation7 + $0x7c0] sm:$0xff]
    %v637 = vld [vmem:[#allocation7 + $0x7c8] sm:$0xff]
    %v638 = vld [vmem:[#allocation7 + $0x7d0] sm:$0xff]
    %v639 = vld [vmem:[#allocation7 + $0x7d8] sm:$0xff]
    %v640 = vld [vmem:[#allocation7 + $0x7e0] sm:$0xff]
    %v641 = vld [vmem:[#allocation7 + $0x7e8] sm:$0xff]
    %v642 = vld [vmem:[#allocation7 + $0x7f0] sm:$0xff]
    %v643 = vld [vmem:[#allocation7 + $0x7f8] sm:$0xff]
    %v644 = vld [vmem:[%s4] sm:$0xf]
    %v646 = vlaneseq
    %v647 = vshrl.u32 %v646, 7
    %v648 = vsub.s32 0, %v647
    %v649 = vrot.slane %v644, %v648
    %v650 = vlaneseq
    %v651 = vshrl.u32 %v650, 7
    %v652 = vsub.s32 1, %v651
    %v653 = vrot.slane %v644, %v652
    %v654 = vlaneseq
    %v655 = vshrl.u32 %v654, 7
    %v656 = vsub.s32 2, %v655
    %v657 = vrot.slane %v644, %v656
    %v658 = vlaneseq
    %v659 = vshrl.u32 %v658, 7
    %v660 = vsub.s32 3, %v659
    %v661 = vrot.slane %v644, %v660
    %666 = vmatprep.subr.mxu0 %v389
    %667 = vmatpush1.msra.mxu0 %v388
    %668 = vmatprep.subr.mxu0 %v393
    %669 = vmatpush1.msra.mxu0 %v392
    %670 = vmatprep.subr.mxu0 %v397
    %671 = vmatpush1.msra.mxu0 %v396
    %672 = vmatprep.subr.mxu0 %v401
    %673 = vmatpush1.msra.mxu0 %v400
    %674 = vmatprep.subr.mxu0 %v405
    %675 = vmatpush1.msra.mxu0 %v404
    %676 = vmatprep.subr.mxu0 %v409
    %677 = vmatpush1.msra.mxu0 %v408
    %678 = vmatprep.subr.mxu0 %v413
    %679 = vmatpush1.msra.mxu0 %v412
    %680 = vmatprep.subr.mxu0 %v417
    %681 = vmatpush1.msra.mxu0 %v416
    %682 = vmatprep.subr.mxu0 %v421
    %683 = vmatpush1.msra.mxu0 %v420
    %684 = vmatprep.subr.mxu0 %v425
    %685 = vmatpush1.msra.mxu0 %v424
    %686 = vmatprep.subr.mxu0 %v429
    %687 = vmatpush1.msra.mxu0 %v428
    %688 = vmatprep.subr.mxu0 %v433
    %689 = vmatpush1.msra.mxu0 %v432
    %690 = vmatprep.subr.mxu0 %v437
    %691 = vmatpush1.msra.mxu0 %v436
    %692 = vmatprep.subr.mxu0 %v441
    %693 = vmatpush1.msra.mxu0 %v440
    %694 = vmatprep.subr.mxu0 %v445
    %695 = vmatpush1.msra.mxu0 %v444
    %696 = vmatprep.subr.mxu0 %v449
    %697 = vmatpush1.msra.mxu0 %v448
    %698 = vmatprep.subr.mxu0 %v453
    %699 = vmatpush1.msra.mxu0 %v452
    %700 = vmatprep.subr.mxu0 %v457
    %701 = vmatpush1.msra.mxu0 %v456
    %702 = vmatprep.subr.mxu0 %v461
    %703 = vmatpush1.msra.mxu0 %v460
    %704 = vmatprep.subr.mxu0 %v465
    %705 = vmatpush1.msra.mxu0 %v464
    %706 = vmatprep.subr.mxu0 %v469
    %707 = vmatpush1.msra.mxu0 %v468
    %708 = vmatprep.subr.mxu0 %v473
    %709 = vmatpush1.msra.mxu0 %v472
    %710 = vmatprep.subr.mxu0 %v477
    %711 = vmatpush1.msra.mxu0 %v476
    %712 = vmatprep.subr.mxu0 %v481
    %713 = vmatpush1.msra.mxu0 %v480
    %714 = vmatprep.subr.mxu0 %v485
    %715 = vmatpush1.msra.mxu0 %v484
    %716 = vmatprep.subr.mxu0 %v489
    %717 = vmatpush1.msra.mxu0 %v488
    %718 = vmatprep.subr.mxu0 %v493
    %719 = vmatpush1.msra.mxu0 %v492
    %720 = vmatprep.subr.mxu0 %v497
    %721 = vmatpush1.msra.mxu0 %v496
    %722 = vmatprep.subr.mxu0 %v501
    %723 = vmatpush1.msra.mxu0 %v500
    %724 = vmatprep.subr.mxu0 %v505
    %725 = vmatpush1.msra.mxu0 %v504
    %726 = vmatprep.subr.mxu0 %v509
    %727 = vmatpush1.msra.mxu0 %v508
    %728 = vmatprep.subr.mxu0 %v513
    %729 = vmatpush1.msra.mxu0 %v512
    %730 = vmatprep.mubr.f32.mxu0 %v385
    %731 = vmatmul.mubr.f32.gmra.mrb[0].mxu0 %v384
    %v732 = vpop.f32.mrb[0].mxu0
    %v733 = vadd.f32 %v649, %v732
    %v734 = vpop.f32.mrb[0].mxu0
    %v735 = vadd.f32 %v653, %v734
    %736 = vdwg.mxu0
    %737 = vmatprep.subr.mxu0 %v517
    %738 = vmatpush1.msra.mxu0 %v516
    %739 = vmatprep.subr.mxu0 %v521
    %740 = vmatpush1.msra.mxu0 %v520
    %741 = vmatprep.subr.mxu0 %v525
    %742 = vmatpush1.msra.mxu0 %v524
    %743 = vmatprep.subr.mxu0 %v529
    %744 = vmatpush1.msra.mxu0 %v528
    %745 = vmatprep.subr.mxu0 %v533
    %746 = vmatpush1.msra.mxu0 %v532
    %747 = vmatprep.subr.mxu0 %v537
    %748 = vmatpush1.msra.mxu0 %v536
    %749 = vmatprep.subr.mxu0 %v541
    %750 = vmatpush1.msra.mxu0 %v540
    %751 = vmatprep.subr.mxu0 %v545
    %752 = vmatpush1.msra.mxu0 %v544
    %753 = vmatprep.subr.mxu0 %v549
    %754 = vmatpush1.msra.mxu0 %v548
    %755 = vmatprep.subr.mxu0 %v553
    %756 = vmatpush1.msra.mxu0 %v552
    %757 = vmatprep.subr.mxu0 %v557
    %758 = vmatpush1.msra.mxu0 %v556
    %759 = vmatprep.subr.mxu0 %v561
    %760 = vmatpush1.msra.mxu0 %v560
    %761 = vmatprep.subr.mxu0 %v565
    %762 = vmatpush1.msra.mxu0 %v564
    %763 = vmatprep.subr.mxu0 %v569
    %764 = vmatpush1.msra.mxu0 %v568
    %765 = vmatprep.subr.mxu0 %v573
    %766 = vmatpush1.msra.mxu0 %v572
    %767 = vmatprep.subr.mxu0 %v577
    %768 = vmatpush1.msra.mxu0 %v576
    %769 = vmatprep.subr.mxu0 %v581
    %770 = vmatpush1.msra.mxu0 %v580
    %771 = vmatprep.subr.mxu0 %v585
    %772 = vmatpush1.msra.mxu0 %v584
    %773 = vmatprep.subr.mxu0 %v589
    %774 = vmatpush1.msra.mxu0 %v588
    %775 = vmatprep.subr.mxu0 %v593
    %776 = vmatpush1.msra.mxu0 %v592
    %777 = vmatprep.subr.mxu0 %v597
    %778 = vmatpush1.msra.mxu0 %v596
    %779 = vmatprep.subr.mxu0 %v601
    %780 = vmatpush1.msra.mxu0 %v600
    %781 = vmatprep.subr.mxu0 %v605
    %782 = vmatpush1.msra.mxu0 %v604
    %783 = vmatprep.subr.mxu0 %v609
    %784 = vmatpush1.msra.mxu0 %v608
    %785 = vmatprep.subr.mxu0 %v613
    %786 = vmatpush1.msra.mxu0 %v612
    %787 = vmatprep.subr.mxu0 %v617
    %788 = vmatpush1.msra.mxu0 %v616
    %789 = vmatprep.subr.mxu0 %v621
    %790 = vmatpush1.msra.mxu0 %v620
    %791 = vmatprep.subr.mxu0 %v625
    %792 = vmatpush1.msra.mxu0 %v624
    %793 = vmatprep.subr.mxu0 %v629
    %794 = vmatpush1.msra.mxu0 %v628
    %795 = vmatprep.subr.mxu0 %v633
    %796 = vmatpush1.msra.mxu0 %v632
    %797 = vmatprep.subr.mxu0 %v637
    %798 = vmatpush1.msra.mxu0 %v636
    %799 = vmatprep.subr.mxu0 %v641
    %800 = vmatpush1.msra.mxu0 %v640
    %801 = vmatprep.mubr.f32.mxu0 %v387
    %802 = vmatmul.mubr.f32.gmra.mrb[0].mxu0 %v386
    %v803 = vpop.f32.mrb[0].mxu0
    %v804 = vadd.f32 %v733, %v803
    %v805 = vpop.f32.mrb[0].mxu0
    %v806 = vadd.f32 %v735, %v805
    %807 = vdwg.mxu0
    %808 = vmatprep.subr.mxu0 %v391
    %809 = vmatpush1.msra.mxu0 %v390
    %810 = vmatprep.subr.mxu0 %v395
    %811 = vmatpush1.msra.mxu0 %v394
    %812 = vmatprep.subr.mxu0 %v399
    %813 = vmatpush1.msra.mxu0 %v398
    %814 = vmatprep.subr.mxu0 %v403
    %815 = vmatpush1.msra.mxu0 %v402
    %816 = vmatprep.subr.mxu0 %v407
    %817 = vmatpush1.msra.mxu0 %v406
    %818 = vmatprep.subr.mxu0 %v411
    %819 = vmatpush1.msra.mxu0 %v410
    %820 = vmatprep.subr.mxu0 %v415
    %821 = vmatpush1.msra.mxu0 %v414
    %822 = vmatprep.subr.mxu0 %v419
    %823 = vmatpush1.msra.mxu0 %v418
    %824 = vmatprep.subr.mxu0 %v423
    %825 = vmatpush1.msra.mxu0 %v422
    %826 = vmatprep.subr.mxu0 %v427
    %827 = vmatpush1.msra.mxu0 %v426
    %828 = vmatprep.subr.mxu0 %v431
    %829 = vmatpush1.msra.mxu0 %v430
    %830 = vmatprep.subr.mxu0 %v435
    %831 = vmatpush1.msra.mxu0 %v434
    %832 = vmatprep.subr.mxu0 %v439
    %833 = vmatpush1.msra.mxu0 %v438
    %834 = vmatprep.subr.mxu0 %v443
    %835 = vmatpush1.msra.mxu0 %v442
    %836 = vmatprep.subr.mxu0 %v447
    %837 = vmatpush1.msra.mxu0 %v446
    %838 = vmatprep.subr.mxu0 %v451
    %839 = vmatpush1.msra.mxu0 %v450
    %840 = vmatprep.subr.mxu0 %v455
    %841 = vmatpush1.msra.mxu0 %v454
    %842 = vmatprep.subr.mxu0 %v459
    %843 = vmatpush1.msra.mxu0 %v458
    %844 = vmatprep.subr.mxu0 %v463
    %845 = vmatpush1.msra.mxu0 %v462
    %846 = vmatprep.subr.mxu0 %v467
    %847 = vmatpush1.msra.mxu0 %v466
    %848 = vmatprep.subr.mxu0 %v471
    %849 = vmatpush1.msra.mxu0 %v470
    %850 = vmatprep.subr.mxu0 %v475
    %851 = vmatpush1.msra.mxu0 %v474
    %852 = vmatprep.subr.mxu0 %v479
    %853 = vmatpush1.msra.mxu0 %v478
    %854 = vmatprep.subr.mxu0 %v483
    %855 = vmatpush1.msra.mxu0 %v482
    %856 = vmatprep.subr.mxu0 %v487
    %857 = vmatpush1.msra.mxu0 %v486
    %858 = vmatprep.subr.mxu0 %v491
    %859 = vmatpush1.msra.mxu0 %v490
    %860 = vmatprep.subr.mxu0 %v495
    %861 = vmatpush1.msra.mxu0 %v494
    %862 = vmatprep.subr.mxu0 %v499
    %863 = vmatpush1.msra.mxu0 %v498
    %864 = vmatprep.subr.mxu0 %v503
    %865 = vmatpush1.msra.mxu0 %v502
    %866 = vmatprep.subr.mxu0 %v507
    %867 = vmatpush1.msra.mxu0 %v506
    %868 = vmatprep.subr.mxu0 %v511
    %869 = vmatpush1.msra.mxu0 %v510
    %870 = vmatprep.subr.mxu0 %v515
    %871 = vmatpush1.msra.mxu0 %v514
    %872 = vmatprep.mubr.f32.mxu0 %v385
    %873 = vmatmul.mubr.f32.gmra.mrb[0].mxu0 %v384
    %v874 = vpop.f32.mrb[0].mxu0
    %v875 = vadd.f32 %v657, %v874
    %v876 = vpop.f32.mrb[0].mxu0
    %v877 = vadd.f32 %v661, %v876
    %878 = vdwg.mxu0
    %879 = vmatprep.subr.mxu0 %v519
    %880 = vmatpush1.msra.mxu0 %v518
    %881 = vmatprep.subr.mxu0 %v523
    %882 = vmatpush1.msra.mxu0 %v522
    %883 = vmatprep.subr.mxu0 %v527
    %884 = vmatpush1.msra.mxu0 %v526
    %885 = vmatprep.subr.mxu0 %v531
    %886 = vmatpush1.msra.mxu0 %v530
    %887 = vmatprep.subr.mxu0 %v535
    %888 = vmatpush1.msra.mxu0 %v534
    %889 = vmatprep.subr.mxu0 %v539
    %890 = vmatpush1.msra.mxu0 %v538
    %891 = vmatprep.subr.mxu0 %v543
    %892 = vmatpush1.msra.mxu0 %v542
    %893 = vmatprep.subr.mxu0 %v547
    %894 = vmatpush1.msra.mxu0 %v546
    %895 = vmatprep.subr.mxu0 %v551
    %896 = vmatpush1.msra.mxu0 %v550
    %897 = vmatprep.subr.mxu0 %v555
    %898 = vmatpush1.msra.mxu0 %v554
    %899 = vmatprep.subr.mxu0 %v559
    %900 = vmatpush1.msra.mxu0 %v558
    %901 = vmatprep.subr.mxu0 %v563
    %902 = vmatpush1.msra.mxu0 %v562
    %903 = vmatprep.subr.mxu0 %v567
    %904 = vmatpush1.msra.mxu0 %v566
    %905 = vmatprep.subr.mxu0 %v571
    %906 = vmatpush1.msra.mxu0 %v570
    %907 = vmatprep.subr.mxu0 %v575
    %908 = vmatpush1.msra.mxu0 %v574
    %909 = vmatprep.subr.mxu0 %v579
    %910 = vmatpush1.msra.mxu0 %v578
    %911 = vmatprep.subr.mxu0 %v583
    %912 = vmatpush1.msra.mxu0 %v582
    %913 = vmatprep.subr.mxu0 %v587
    %914 = vmatpush1.msra.mxu0 %v586
    %915 = vmatprep.subr.mxu0 %v591
    %916 = vmatpush1.msra.mxu0 %v590
    %917 = vmatprep.subr.mxu0 %v595
    %918 = vmatpush1.msra.mxu0 %v594
    %919 = vmatprep.subr.mxu0 %v599
    %920 = vmatpush1.msra.mxu0 %v598
    %921 = vmatprep.subr.mxu0 %v603
    %922 = vmatpush1.msra.mxu0 %v602
    %923 = vmatprep.subr.mxu0 %v607
    %924 = vmatpush1.msra.mxu0 %v606
    %925 = vmatprep.subr.mxu0 %v611
    %926 = vmatpush1.msra.mxu0 %v610
    %927 = vmatprep.subr.mxu0 %v615
    %928 = vmatpush1.msra.mxu0 %v614
    %929 = vmatprep.subr.mxu0 %v619
    %930 = vmatpush1.msra.mxu0 %v618
    %931 = vmatprep.subr.mxu0 %v623
    %932 = vmatpush1.msra.mxu0 %v622
    %933 = vmatprep.subr.mxu0 %v627
    %934 = vmatpush1.msra.mxu0 %v626
    %935 = vmatprep.subr.mxu0 %v631
    %936 = vmatpush1.msra.mxu0 %v630
    %937 = vmatprep.subr.mxu0 %v635
    %938 = vmatpush1.msra.mxu0 %v634
    %939 = vmatprep.subr.mxu0 %v639
    %940 = vmatpush1.msra.mxu0 %v638
    %941 = vmatprep.subr.mxu0 %v643
    %942 = vmatpush1.msra.mxu0 %v642
    %943 = vmatprep.mubr.f32.mxu0 %v387
    %944 = vmatmul.mubr.f32.gmra.mrb[0].mxu0 %v386
    %v945 = vpop.f32.mrb[0].mxu0
    %v946 = vadd.f32 %v875, %v945
    %v947 = vpop.f32.mrb[0].mxu0
    %v948 = vadd.f32 %v877, %v947
    %949 = vdwg.mxu0
    %v950 = vmax.f32 %v804, 0.0
    %v951 = vmax.f32 %v806, 0.0
    %v952 = vmax.f32 %v946, 0.0
    %v953 = vmax.f32 %v948, 0.0
    %v954 = vld [vmem:[#allocation8] sm:$0xff]
    %v955 = vld [vmem:[#allocation8 + $0x8] sm:$0xff]
    %v956 = vld [vmem:[#allocation8 + $0x10] sm:$0xff]
    %v957 = vld [vmem:[#allocation8 + $0x18] sm:$0xff]
    %v958 = vld [vmem:[#allocation8 + $0x20] sm:$0xff]
    %v959 = vld [vmem:[#allocation8 + $0x28] sm:$0xff]
    %v960 = vld [vmem:[#allocation8 + $0x30] sm:$0xff]
    %v961 = vld [vmem:[#allocation8 + $0x38] sm:$0xff]
    %v962 = vld [vmem:[#allocation8 + $0x40] sm:$0xff]
    %v963 = vld [vmem:[#allocation8 + $0x48] sm:$0xff]
    %v964 = vld [vmem:[#allocation8 + $0x50] sm:$0xff]
    %v965 = vld [vmem:[#allocation8 + $0x58] sm:$0xff]
    %v966 = vld [vmem:[#allocation8 + $0x60] sm:$0xff]
    %v967 = vld [vmem:[#allocation8 + $0x68] sm:$0xff]
    %v968 = vld [vmem:[#allocation8 + $0x70] sm:$0xff]
    %v969 = vld [vmem:[#allocation8 + $0x78] sm:$0xff]
    %v970 = vld [vmem:[#allocation8 + $0x80] sm:$0xff]
    %v971 = vld [vmem:[#allocation8 + $0x88] sm:$0xff]
    %v972 = vld [vmem:[#allocation8 + $0x90] sm:$0xff]
    %v973 = vld [vmem:[#allocation8 + $0x98] sm:$0xff]
    %v974 = vld [vmem:[#allocation8 + $0xa0] sm:$0xff]
    %v975 = vld [vmem:[#allocation8 + $0xa8] sm:$0xff]
    %v976 = vld [vmem:[#allocation8 + $0xb0] sm:$0xff]
    %v977 = vld [vmem:[#allocation8 + $0xb8] sm:$0xff]
    %v978 = vld [vmem:[#allocation8 + $0xc0] sm:$0xff]
    %v979 = vld [vmem:[#allocation8 + $0xc8] sm:$0xff]
    %v980 = vld [vmem:[#allocation8 + $0xd0] sm:$0xff]
    %v981 = vld [vmem:[#allocation8 + $0xd8] sm:$0xff]
    %v982 = vld [vmem:[#allocation8 + $0xe0] sm:$0xff]
    %v983 = vld [vmem:[#allocation8 + $0xe8] sm:$0xff]
    %v984 = vld [vmem:[#allocation8 + $0xf0] sm:$0xff]
    %v985 = vld [vmem:[#allocation8 + $0xf8] sm:$0xff]
    %v986 = vld [vmem:[#allocation8 + $0x100] sm:$0xff]
    %v987 = vld [vmem:[#allocation8 + $0x108] sm:$0xff]
    %v988 = vld [vmem:[#allocation8 + $0x110] sm:$0xff]
    %v989 = vld [vmem:[#allocation8 + $0x118] sm:$0xff]
    %v990 = vld [vmem:[#allocation8 + $0x120] sm:$0xff]
    %v991 = vld [vmem:[#allocation8 + $0x128] sm:$0xff]
    %v992 = vld [vmem:[#allocation8 + $0x130] sm:$0xff]
    %v993 = vld [vmem:[#allocation8 + $0x138] sm:$0xff]
    %v994 = vld [vmem:[#allocation8 + $0x140] sm:$0xff]
    %v995 = vld [vmem:[#allocation8 + $0x148] sm:$0xff]
    %v996 = vld [vmem:[#allocation8 + $0x150] sm:$0xff]
    %v997 = vld [vmem:[#allocation8 + $0x158] sm:$0xff]
    %v998 = vld [vmem:[#allocation8 + $0x160] sm:$0xff]
    %v999 = vld [vmem:[#allocation8 + $0x168] sm:$0xff]
    %v1000 = vld [vmem:[#allocation8 + $0x170] sm:$0xff]
    %v1001 = vld [vmem:[#allocation8 + $0x178] sm:$0xff]
    %v1002 = vld [vmem:[#allocation8 + $0x180] sm:$0xff]
    %v1003 = vld [vmem:[#allocation8 + $0x188] sm:$0xff]
    %v1004 = vld [vmem:[#allocation8 + $0x190] sm:$0xff]
    %v1005 = vld [vmem:[#allocation8 + $0x198] sm:$0xff]
    %v1006 = vld [vmem:[#allocation8 + $0x1a0] sm:$0xff]
    %v1007 = vld [vmem:[#allocation8 + $0x1a8] sm:$0xff]
    %v1008 = vld [vmem:[#allocation8 + $0x1b0] sm:$0xff]
    %v1009 = vld [vmem:[#allocation8 + $0x1b8] sm:$0xff]
    %v1010 = vld [vmem:[#allocation8 + $0x1c0] sm:$0xff]
    %v1011 = vld [vmem:[#allocation8 + $0x1c8] sm:$0xff]
    %v1012 = vld [vmem:[#allocation8 + $0x1d0] sm:$0xff]
    %v1013 = vld [vmem:[#allocation8 + $0x1d8] sm:$0xff]
    %v1014 = vld [vmem:[#allocation8 + $0x1e0] sm:$0xff]
    %v1015 = vld [vmem:[#allocation8 + $0x1e8] sm:$0xff]
    %v1016 = vld [vmem:[#allocation8 + $0x1f0] sm:$0xff]
    %v1017 = vld [vmem:[#allocation8 + $0x1f8] sm:$0xff]
    %v1018 = vld [vmem:[%s6] sm:$0x1]
    %1019 = vmatprep.subr.mxu0 0.0
    %1020 = vmatpush1.msra.mxu0 %v954
    %1021 = vmatprep.subr.mxu0 0.0
    %1022 = vmatpush1.msra.mxu0 %v955
    %1023 = vmatprep.subr.mxu0 0.0
    %1024 = vmatpush1.msra.mxu0 %v956
    %1025 = vmatprep.subr.mxu0 0.0
    %1026 = vmatpush1.msra.mxu0 %v957
    %1027 = vmatprep.subr.mxu0 0.0
    %1028 = vmatpush1.msra.mxu0 %v958
    %1029 = vmatprep.subr.mxu0 0.0
    %1030 = vmatpush1.msra.mxu0 %v959
    %1031 = vmatprep.subr.mxu0 0.0
    %1032 = vmatpush1.msra.mxu0 %v960
    %1033 = vmatprep.subr.mxu0 0.0
    %1034 = vmatpush1.msra.mxu0 %v961
    %1035 = vmatprep.subr.mxu0 0.0
    %1036 = vmatpush1.msra.mxu0 %v962
    %1037 = vmatprep.subr.mxu0 0.0
    %1038 = vmatpush1.msra.mxu0 %v963
    %1039 = vmatprep.subr.mxu0 0.0
    %1040 = vmatpush1.msra.mxu0 %v964
    %1041 = vmatprep.subr.mxu0 0.0
    %1042 = vmatpush1.msra.mxu0 %v965
    %1043 = vmatprep.subr.mxu0 0.0
    %1044 = vmatpush1.msra.mxu0 %v966
    %1045 = vmatprep.subr.mxu0 0.0
    %1046 = vmatpush1.msra.mxu0 %v967
    %1047 = vmatprep.subr.mxu0 0.0
    %1048 = vmatpush1.msra.mxu0 %v968
    %1049 = vmatprep.subr.mxu0 0.0
    %1050 = vmatpush1.msra.mxu0 %v969
    %1051 = vmatprep.subr.mxu0 0.0
    %1052 = vmatpush1.msra.mxu0 %v970
    %1053 = vmatprep.subr.mxu0 0.0
    %1054 = vmatpush1.msra.mxu0 %v971
    %1055 = vmatprep.subr.mxu0 0.0
    %1056 = vmatpush1.msra.mxu0 %v972
    %1057 = vmatprep.subr.mxu0 0.0
    %1058 = vmatpush1.msra.mxu0 %v973
    %1059 = vmatprep.subr.mxu0 0.0
    %1060 = vmatpush1.msra.mxu0 %v974
    %1061 = vmatprep.subr.mxu0 0.0
    %1062 = vmatpush1.msra.mxu0 %v975
    %1063 = vmatprep.subr.mxu0 0.0
    %1064 = vmatpush1.msra.mxu0 %v976
    %1065 = vmatprep.subr.mxu0 0.0
    %1066 = vmatpush1.msra.mxu0 %v977
    %1067 = vmatprep.subr.mxu0 0.0
    %1068 = vmatpush1.msra.mxu0 %v978
    %1069 = vmatprep.subr.mxu0 0.0
    %1070 = vmatpush1.msra.mxu0 %v979
    %1071 = vmatprep.subr.mxu0 0.0
    %1072 = vmatpush1.msra.mxu0 %v980
    %1073 = vmatprep.subr.mxu0 0.0
    %1074 = vmatpush1.msra.mxu0 %v981
    %1075 = vmatprep.subr.mxu0 0.0
    %1076 = vmatpush1.msra.mxu0 %v982
    %1077 = vmatprep.subr.mxu0 0.0
    %1078 = vmatpush1.msra.mxu0 %v983
    %1079 = vmatprep.subr.mxu0 0.0
    %1080 = vmatpush1.msra.mxu0 %v984
    %1081 = vmatprep.subr.mxu0 0.0
    %1082 = vmatpush1.msra.mxu0 %v985
    %1083 = vmatprep.mubr.f32.mxu0 %v951
    %1084 = vmatmul.mubr.f32.gmra.mrb[0].mxu0 %v950
    %v1085 = vpop.f32.mrb[0].mxu0
    %v1086 = vadd.f32 %v1018, %v1085
    %v1087 = vpop.f32.mrb[0].mxu0
    %1088 = vdwg.mxu0
    %1089 = vmatprep.subr.mxu0 0.0
    %1090 = vmatpush1.msra.mxu0 %v986
    %1091 = vmatprep.subr.mxu0 0.0
    %1092 = vmatpush1.msra.mxu0 %v987
    %1093 = vmatprep.subr.mxu0 0.0
    %1094 = vmatpush1.msra.mxu0 %v988
    %1095 = vmatprep.subr.mxu0 0.0
    %1096 = vmatpush1.msra.mxu0 %v989
    %1097 = vmatprep.subr.mxu0 0.0
    %1098 = vmatpush1.msra.mxu0 %v990
    %1099 = vmatprep.subr.mxu0 0.0
    %1100 = vmatpush1.msra.mxu0 %v991
    %1101 = vmatprep.subr.mxu0 0.0
    %1102 = vmatpush1.msra.mxu0 %v992
    %1103 = vmatprep.subr.mxu0 0.0
    %1104 = vmatpush1.msra.mxu0 %v993
    %1105 = vmatprep.subr.mxu0 0.0
    %1106 = vmatpush1.msra.mxu0 %v994
    %1107 = vmatprep.subr.mxu0 0.0
    %1108 = vmatpush1.msra.mxu0 %v995
    %1109 = vmatprep.subr.mxu0 0.0
    %1110 = vmatpush1.msra.mxu0 %v996
    %1111 = vmatprep.subr.mxu0 0.0
    %1112 = vmatpush1.msra.mxu0 %v997
    %1113 = vmatprep.subr.mxu0 0.0
    %1114 = vmatpush1.msra.mxu0 %v998
    %1115 = vmatprep.subr.mxu0 0.0
    %1116 = vmatpush1.msra.mxu0 %v999
    %1117 = vmatprep.subr.mxu0 0.0
    %1118 = vmatpush1.msra.mxu0 %v1000
    %1119 = vmatprep.subr.mxu0 0.0
    %1120 = vmatpush1.msra.mxu0 %v1001
    %1121 = vmatprep.subr.mxu0 0.0
    %1122 = vmatpush1.msra.mxu0 %v1002
    %1123 = vmatprep.subr.mxu0 0.0
    %1124 = vmatpush1.msra.mxu0 %v1003
    %1125 = vmatprep.subr.mxu0 0.0
    %1126 = vmatpush1.msra.mxu0 %v1004
    %1127 = vmatprep.subr.mxu0 0.0
    %1128 = vmatpush1.msra.mxu0 %v1005
    %1129 = vmatprep.subr.mxu0 0.0
    %1130 = vmatpush1.msra.mxu0 %v1006
    %1131 = vmatprep.subr.mxu0 0.0
    %1132 = vmatpush1.msra.mxu0 %v1007
    %1133 = vmatprep.subr.mxu0 0.0
    %1134 = vmatpush1.msra.mxu0 %v1008
    %1135 = vmatprep.subr.mxu0 0.0
    %1136 = vmatpush1.msra.mxu0 %v1009
    %1137 = vmatprep.subr.mxu0 0.0
    %1138 = vmatpush1.msra.mxu0 %v1010
    %1139 = vmatprep.subr.mxu0 0.0
    %1140 = vmatpush1.msra.mxu0 %v1011
    %1141 = vmatprep.subr.mxu0 0.0
    %1142 = vmatpush1.msra.mxu0 %v1012
    %1143 = vmatprep.subr.mxu0 0.0
    %1144 = vmatpush1.msra.mxu0 %v1013
    %1145 = vmatprep.subr.mxu0 0.0
    %1146 = vmatpush1.msra.mxu0 %v1014
    %1147 = vmatprep.subr.mxu0 0.0
    %1148 = vmatpush1.msra.mxu0 %v1015
    %1149 = vmatprep.subr.mxu0 0.0
    %1150 = vmatpush1.msra.mxu0 %v1016
    %1151 = vmatprep.subr.mxu0 0.0
    %1152 = vmatpush1.msra.mxu0 %v1017
    %1153 = vmatprep.mubr.f32.mxu0 %v953
    %1154 = vmatmul.mubr.f32.gmra.mrb[0].mxu0 %v952
    %v1155 = vpop.f32.mrb[0].mxu0
    %v1156 = vadd.f32 %v1086, %v1155
    %v1157 = vpop.f32.mrb[0].mxu0
    %1158 = vdwg.mxu0
    %1159 = vst [vmem:[#allocation10] sm:$0x1] %v1156
    // Predicated region
    $region46: #{tpu_custom_call.1} parent=1 // pred_check
      _
    $region47: #{tpu_custom_call.1} parent=1 // pred_check_branch
      %1161 = sbr.rel (0) target = $region49
    $region48: #{tpu_custom_call.1} parent=1 // pred_region
      %s1163 = ssub.s32 16, 16
      %1164 = vsyncadd [#allocation4], %s1163
      %s1166 = sshll.u32 [#allocation10], 4
      %s1167 = int_to_ptr.vmem [resolvable:$true] %s1166
      %1169 = dma.vmem_to_hbm [thread:$0]  %s1167, 16, %s7, [#allocation4]
    $region49: #{tpu_custom_call.1} parent=1 // pred_fallthru
      _
    // Predicated region
    $region50: #{tpu_custom_call.1} parent=1 // pred_check
      _
    $region51: #{tpu_custom_call.1} parent=1 // pred_check_branch
      %1171 = sbr.rel (0) target = $region53
    $region52: #{tpu_custom_call.1} parent=1 // pred_region
      %1172 = dma.done [#allocation4], 16
    $region53: #{tpu_custom_call.1} parent=1 // pred_fallthru
      _
    %1173 = vsyncpa [#allocation3], 1
    %1174 = vsyncpa [#allocation6], 1
    %1175 = vsyncpa [#allocation9], 1
    %1176 = vsyncpa [#allocation4], 1

</llo_original>
